<compile_context>
chip_gen: v6e
topology: v6e:2x2x1
jax: 0.10.0
libtpu: 0.0.40
codegen_flags: <defaults>
</compile_context>

<pallas_src>
import jax
import jax.numpy as jnp
from jax.experimental import pallas as pl
from jax.experimental.pallas import tpu as pltpu

HIDDEN = 256
LANE = 128          # TPU lane width: feature / output dims padded to this
BATCH_TILE = 128    # rows per grid step (MXU M dimension)


def _round_up(n, m):
    return ((n + m - 1) // m) * m


def _qnets_kernel(x_ref,
                  w1a_ref, b1a_ref, w2a_ref, b2a_ref, w3a_ref, b3a_ref,
                  w1b_ref, b1b_ref, w2b_ref, b2b_ref, w3b_ref, b3b_ref,
                  q1_ref, q2_ref):
    """Fused twin-Q MLP for one batch tile: matmuls on MXU (bf16 in, f32 acc),
    bias/ReLU/Tanh on VPU/EUP in f32."""
    x = x_ref[...]                                            # bf16 [TB, IN_PAD]

    def mlp(w1_ref, b1_ref, w2_ref, b2_ref, w3_ref, b3_ref, out_ref):
        h = jnp.dot(x, w1_ref[...], preferred_element_type=jnp.float32)
        h = jnp.maximum(h + b1_ref[...], 0.0)                 # ReLU (f32)
        h = jnp.dot(h.astype(jnp.bfloat16), w2_ref[...],
                    preferred_element_type=jnp.float32)
        h = jnp.maximum(h + b2_ref[...], 0.0)                 # ReLU (f32)
        h = jnp.dot(h.astype(jnp.bfloat16), w3_ref[...],
                    preferred_element_type=jnp.float32)
        out_ref[...] = jnp.tanh(h + b3_ref[...]).astype(out_ref.dtype)  # Tanh

    mlp(w1a_ref, b1a_ref, w2a_ref, b2a_ref, w3a_ref, b3a_ref, q1_ref)
    mlp(w1b_ref, b1b_ref, w2b_ref, b2b_ref, w3b_ref, b3b_ref, q2_ref)


def _pad_and_cast(params, in_pad):
    """Zero-pad W1 rows to in_pad and the 1-wide last layer to LANE columns;
    cast weights to bf16 (MXU fast path), keep biases f32."""
    w1, b1, w2, b2, w3, b3 = params
    w1p = jnp.pad(w1, ((0, in_pad - w1.shape[0]), (0, 0))).astype(jnp.bfloat16)
    w2p = w2.astype(jnp.bfloat16)
    w3p = jnp.pad(w3, ((0, 0), (0, LANE - w3.shape[1]))).astype(jnp.bfloat16)
    b3p = jnp.pad(b3, ((0, 0), (0, LANE - b3.shape[1]))).astype(jnp.float32)
    return (w1p, b1.astype(jnp.float32), w2p, b2.astype(jnp.float32), w3p, b3p)


def qnetworks_forward(state, action, params1, params2, batch_tile=BATCH_TILE):
    """Returns (q1, q2), each [batch, 1] float32."""
    batch = state.shape[0]
    in_features = state.shape[1] + action.shape[1]
    in_pad = _round_up(max(in_features, LANE), LANE)

    # Concat + lane-pad the input, cast to bf16 for the MXU.
    x = jnp.concatenate([state, action], axis=1)
    x = jnp.pad(x, ((0, 0), (0, in_pad - in_features))).astype(jnp.bfloat16)

    # Pad batch to a multiple of the batch tile.
    pb = _round_up(max(batch, batch_tile), batch_tile)
    if pb != batch:
        x = jnp.pad(x, ((0, pb - batch), (0, 0)))
    nb = pb // batch_tile

    p1 = _pad_and_cast(params1, in_pad)
    p2 = _pad_and_cast(params2, in_pad)

    def row_spec(cols):
        # blocks that march down the batch dimension
        return pl.BlockSpec((batch_tile, cols), lambda i: (i, 0))

    def const_spec(shape):
        # full-array block, same block every grid step -> stays VMEM-resident
        return pl.BlockSpec(shape, lambda i: tuple(0 for _ in shape))

    in_specs = [row_spec(in_pad)]
    for p in (p1, p2):
        for arr in p:
            in_specs.append(const_spec(arr.shape))

    q1p, q2p = pl.pallas_call(
        _qnets_kernel,
        out_shape=(jax.ShapeDtypeStruct((pb, LANE), jnp.float32),
                   jax.ShapeDtypeStruct((pb, LANE), jnp.float32)),
        grid=(nb,),
        in_specs=in_specs,
        out_specs=(row_spec(LANE), row_spec(LANE)),
        compiler_params=pltpu.CompilerParams(
            dimension_semantics=("parallel",)),   # v7x: split tiles across TCs
    )(x, *p1, *p2)

    return q1p[:batch, :1], q2p[:batch, :1]


def init_qnet_params(key, in_features):
    """PyTorch-Linear-style uniform init (f32 logical params, un-padded)."""
    ks = jax.random.split(key, 6)

    def lin(kw, kb, fan_in, fan_out):
        bound = 1.0 / jnp.sqrt(jnp.float32(fan_in))
        w = jax.random.uniform(kw, (fan_in, fan_out), jnp.float32, -bound, bound)
        b = jax.random.uniform(kb, (1, fan_out), jnp.float32, -bound, bound)
        return w, b

    w1, b1 = lin(ks[0], ks[1], in_features, HIDDEN)
    w2, b2 = lin(ks[2], ks[3], HIDDEN, HIDDEN)
    w3, b3 = lin(ks[4], ks[5], HIDDEN, 1)
    return (w1, b1, w2, b2, w3, b3)


def reference_forward(state, action, params1, params2):
    """Pure-JAX reference mirroring the kernel's bf16-operand / f32-accumulate math."""
    x = jnp.concatenate([state, action], axis=1).astype(jnp.bfloat16)

    def mlp(params):
        w1, b1, w2, b2, w3, b3 = params
        h = jnp.dot(x, w1.astype(jnp.bfloat16),
                    preferred_element_type=jnp.float32)
        h = jnp.maximum(h + b1, 0.0)
        h = jnp.dot(h.astype(jnp.bfloat16), w2.astype(jnp.bfloat16),
                    preferred_element_type=jnp.float32)
        h = jnp.maximum(h + b2, 0.0)
        h = jnp.dot(h.astype(jnp.bfloat16), w3.astype(jnp.bfloat16),
                    preferred_element_type=jnp.float32)
        return jnp.tanh(h + b3)

    return mlp(params1), mlp(params2)


if __name__ == "__main__":
    batch = 256              # fills two 128-row MXU tiles (grid=(2,))
    state_space_len = 24
    action_space_len = 8

    key = jax.random.PRNGKey(0)
    k_s, k_a, k_p1, k_p2 = jax.random.split(key, 4)
    state = jax.random.normal(k_s, (batch, state_space_len), jnp.float32)
    action = jax.random.normal(k_a, (batch, action_space_len), jnp.float32)

    in_features = state_space_len + action_space_len
    params1 = init_qnet_params(k_p1, in_features)
    params2 = init_qnet_params(k_p2, in_features)

    q1, q2 = qnetworks_forward(state, action, params1, params2)
    q1, q2 = jax.block_until_ready((q1, q2))

    r1, r2 = reference_forward(state, action, params1, params2)
    assert q1.shape == (batch, 1) and q2.shape == (batch, 1)
    assert jnp.allclose(q1, r1, atol=5e-3, rtol=5e-3)
    assert jnp.allclose(q2, r2, atol=5e-3, rtol=5e-3)

    print("KERNEL_OK")
</pallas_src>

<mosaic_0001>
module attributes {stable_mosaic.version = 11 : i64} {
  func.func @_qnets_kernel(%arg0: i32, %arg1: memref<128x128xbf16, #tpu.memory_space<vmem>>, %arg2: memref<128x256xbf16, #tpu.memory_space<vmem>>, %arg3: memref<1x256xf32, #tpu.memory_space<vmem>>, %arg4: memref<256x256xbf16, #tpu.memory_space<vmem>>, %arg5: memref<1x256xf32, #tpu.memory_space<vmem>>, %arg6: memref<256x128xbf16, #tpu.memory_space<vmem>>, %arg7: memref<1x128xf32, #tpu.memory_space<vmem>>, %arg8: memref<128x256xbf16, #tpu.memory_space<vmem>>, %arg9: memref<1x256xf32, #tpu.memory_space<vmem>>, %arg10: memref<256x256xbf16, #tpu.memory_space<vmem>>, %arg11: memref<1x256xf32, #tpu.memory_space<vmem>>, %arg12: memref<256x128xbf16, #tpu.memory_space<vmem>>, %arg13: memref<1x128xf32, #tpu.memory_space<vmem>>, %arg14: memref<128x128xf32, #tpu.memory_space<vmem>>, %arg15: memref<128x128xf32, #tpu.memory_space<vmem>>) attributes {dimension_semantics = [#tpu.dimension_semantics<parallel>], iteration_bounds = array<i64: 2>, scalar_prefetch = 0 : i64, scratch_operands = 0 : i64, tpu.core_type = #tpu.core_type<tc>, window_params = [{transform_indices = @transform_0, window_bounds = array<i64: 128, 128>}, {pipeline_mode = #tpu.pipeline_mode<synchronous>, transform_indices = @transform_1, window_bounds = array<i64: 128, 256>}, {pipeline_mode = #tpu.pipeline_mode<synchronous>, transform_indices = @transform_2, window_bounds = array<i64: 1, 256>}, {pipeline_mode = #tpu.pipeline_mode<synchronous>, transform_indices = @transform_3, window_bounds = array<i64: 256, 256>}, {pipeline_mode = #tpu.pipeline_mode<synchronous>, transform_indices = @transform_4, window_bounds = array<i64: 1, 256>}, {pipeline_mode = #tpu.pipeline_mode<synchronous>, transform_indices = @transform_5, window_bounds = array<i64: 256, 128>}, {pipeline_mode = #tpu.pipeline_mode<synchronous>, transform_indices = @transform_6, window_bounds = array<i64: 1, 128>}, {pipeline_mode = #tpu.pipeline_mode<synchronous>, transform_indices = @transform_7, window_bounds = array<i64: 128, 256>}, {pipeline_mode = #tpu.pipeline_mode<synchronous>, transform_indices = @transform_8, window_bounds = array<i64: 1, 256>}, {pipeline_mode = #tpu.pipeline_mode<synchronous>, transform_indices = @transform_9, window_bounds = array<i64: 256, 256>}, {pipeline_mode = #tpu.pipeline_mode<synchronous>, transform_indices = @transform_10, window_bounds = array<i64: 1, 256>}, {pipeline_mode = #tpu.pipeline_mode<synchronous>, transform_indices = @transform_11, window_bounds = array<i64: 256, 128>}, {pipeline_mode = #tpu.pipeline_mode<synchronous>, transform_indices = @transform_12, window_bounds = array<i64: 1, 128>}, {transform_indices = @transform_13, window_bounds = array<i64: 128, 128>}, {transform_indices = @transform_14, window_bounds = array<i64: 128, 128>}]} {
    %c0 = arith.constant 0 : index
    %c0_0 = arith.constant 0 : index
    %0 = vector.load %arg1[%c0, %c0_0] : memref<128x128xbf16, #tpu.memory_space<vmem>>, vector<128x128xbf16>
    %c0_1 = arith.constant 0 : index
    %c0_2 = arith.constant 0 : index
    %1 = vector.load %arg2[%c0_1, %c0_2] : memref<128x256xbf16, #tpu.memory_space<vmem>>, vector<128x256xbf16>
    %cst = arith.constant dense<0.000000e+00> : vector<128x256xf32>
    %2 = tpu.matmul %0, %1, %cst {dimension_numbers = #tpu.dot_dimension_numbers<[1], [0], [0], [1], [0, 0, 1, 1], [], []>} : vector<128x128xbf16>, vector<128x256xbf16>, vector<128x256xf32> -> vector<128x256xf32>
    %c0_3 = arith.constant 0 : index
    %c0_4 = arith.constant 0 : index
    %3 = vector.load %arg3[%c0_3, %c0_4] : memref<1x256xf32, #tpu.memory_space<vmem>>, vector<1x256xf32>
    %4 = vector.broadcast %3 : vector<1x256xf32> to vector<128x256xf32>
    %5 = arith.addf %2, %4 : vector<128x256xf32>
    %cst_5 = arith.constant 0.000000e+00 : f32
    %6 = vector.broadcast %cst_5 : f32 to vector<128x256xf32>
    %7 = arith.maximumf %5, %6 : vector<128x256xf32>
    %8 = arith.truncf %7 : vector<128x256xf32> to vector<128x256xbf16>
    %c0_6 = arith.constant 0 : index
    %c0_7 = arith.constant 0 : index
    %9 = vector.load %arg4[%c0_6, %c0_7] : memref<256x256xbf16, #tpu.memory_space<vmem>>, vector<256x256xbf16>
    %cst_8 = arith.constant dense<0.000000e+00> : vector<128x256xf32>
    %10 = tpu.matmul %8, %9, %cst_8 {dimension_numbers = #tpu.dot_dimension_numbers<[1], [0], [0], [1], [0, 0, 1, 1], [], []>} : vector<128x256xbf16>, vector<256x256xbf16>, vector<128x256xf32> -> vector<128x256xf32>
    %c0_9 = arith.constant 0 : index
    %c0_10 = arith.constant 0 : index
    %11 = vector.load %arg5[%c0_9, %c0_10] : memref<1x256xf32, #tpu.memory_space<vmem>>, vector<1x256xf32>
    %12 = vector.broadcast %11 : vector<1x256xf32> to vector<128x256xf32>
    %13 = arith.addf %10, %12 : vector<128x256xf32>
    %cst_11 = arith.constant 0.000000e+00 : f32
    %14 = vector.broadcast %cst_11 : f32 to vector<128x256xf32>
    %15 = arith.maximumf %13, %14 : vector<128x256xf32>
    %16 = arith.truncf %15 : vector<128x256xf32> to vector<128x256xbf16>
    %c0_12 = arith.constant 0 : index
    %c0_13 = arith.constant 0 : index
    %17 = vector.load %arg6[%c0_12, %c0_13] : memref<256x128xbf16, #tpu.memory_space<vmem>>, vector<256x128xbf16>
    %cst_14 = arith.constant dense<0.000000e+00> : vector<128x128xf32>
    %18 = tpu.matmul %16, %17, %cst_14 {dimension_numbers = #tpu.dot_dimension_numbers<[1], [0], [0], [1], [0, 0, 1, 1], [], []>} : vector<128x256xbf16>, vector<256x128xbf16>, vector<128x128xf32> -> vector<128x128xf32>
    %c0_15 = arith.constant 0 : index
    %c0_16 = arith.constant 0 : index
    %19 = vector.load %arg7[%c0_15, %c0_16] : memref<1x128xf32, #tpu.memory_space<vmem>>, vector<1x128xf32>
    %20 = vector.broadcast %19 : vector<1x128xf32> to vector<128x128xf32>
    %21 = arith.addf %18, %20 : vector<128x128xf32>
    %22 = math.tanh %21 : vector<128x128xf32>
    %c0_17 = arith.constant 0 : index
    %c0_18 = arith.constant 0 : index
    %23 = vector.load %arg14[%c0_17, %c0_18] : memref<128x128xf32, #tpu.memory_space<vmem>>, vector<128x128xf32>
    tpu.vector_store %arg14[%c0_17, %c0_18], %22 {strides = array<i32>} : memref<128x128xf32, #tpu.memory_space<vmem>>, vector<128x128xf32>,
    %c0_19 = arith.constant 0 : index
    %c0_20 = arith.constant 0 : index
    %24 = vector.load %arg8[%c0_19, %c0_20] : memref<128x256xbf16, #tpu.memory_space<vmem>>, vector<128x256xbf16>
    %cst_21 = arith.constant dense<0.000000e+00> : vector<128x256xf32>
    %25 = tpu.matmul %0, %24, %cst_21 {dimension_numbers = #tpu.dot_dimension_numbers<[1], [0], [0], [1], [0, 0, 1, 1], [], []>} : vector<128x128xbf16>, vector<128x256xbf16>, vector<128x256xf32> -> vector<128x256xf32>
    %c0_22 = arith.constant 0 : index
    %c0_23 = arith.constant 0 : index
    %26 = vector.load %arg9[%c0_22, %c0_23] : memref<1x256xf32, #tpu.memory_space<vmem>>, vector<1x256xf32>
    %27 = vector.broadcast %26 : vector<1x256xf32> to vector<128x256xf32>
    %28 = arith.addf %25, %27 : vector<128x256xf32>
    %cst_24 = arith.constant 0.000000e+00 : f32
    %29 = vector.broadcast %cst_24 : f32 to vector<128x256xf32>
    %30 = arith.maximumf %28, %29 : vector<128x256xf32>
    %31 = arith.truncf %30 : vector<128x256xf32> to vector<128x256xbf16>
    %c0_25 = arith.constant 0 : index
    %c0_26 = arith.constant 0 : index
    %32 = vector.load %arg10[%c0_25, %c0_26] : memref<256x256xbf16, #tpu.memory_space<vmem>>, vector<256x256xbf16>
    %cst_27 = arith.constant dense<0.000000e+00> : vector<128x256xf32>
    %33 = tpu.matmul %31, %32, %cst_27 {dimension_numbers = #tpu.dot_dimension_numbers<[1], [0], [0], [1], [0, 0, 1, 1], [], []>} : vector<128x256xbf16>, vector<256x256xbf16>, vector<128x256xf32> -> vector<128x256xf32>
    %c0_28 = arith.constant 0 : index
    %c0_29 = arith.constant 0 : index
    %34 = vector.load %arg11[%c0_28, %c0_29] : memref<1x256xf32, #tpu.memory_space<vmem>>, vector<1x256xf32>
    %35 = vector.broadcast %34 : vector<1x256xf32> to vector<128x256xf32>
    %36 = arith.addf %33, %35 : vector<128x256xf32>
    %cst_30 = arith.constant 0.000000e+00 : f32
    %37 = vector.broadcast %cst_30 : f32 to vector<128x256xf32>
    %38 = arith.maximumf %36, %37 : vector<128x256xf32>
    %39 = arith.truncf %38 : vector<128x256xf32> to vector<128x256xbf16>
    %c0_31 = arith.constant 0 : index
    %c0_32 = arith.constant 0 : index
    %40 = vector.load %arg12[%c0_31, %c0_32] : memref<256x128xbf16, #tpu.memory_space<vmem>>, vector<256x128xbf16>
    %cst_33 = arith.constant dense<0.000000e+00> : vector<128x128xf32>
    %41 = tpu.matmul %39, %40, %cst_33 {dimension_numbers = #tpu.dot_dimension_numbers<[1], [0], [0], [1], [0, 0, 1, 1], [], []>} : vector<128x256xbf16>, vector<256x128xbf16>, vector<128x128xf32> -> vector<128x128xf32>
    %c0_34 = arith.constant 0 : index
    %c0_35 = arith.constant 0 : index
    %42 = vector.load %arg13[%c0_34, %c0_35] : memref<1x128xf32, #tpu.memory_space<vmem>>, vector<1x128xf32>
    %43 = vector.broadcast %42 : vector<1x128xf32> to vector<128x128xf32>
    %44 = arith.addf %41, %43 : vector<128x128xf32>
    %45 = math.tanh %44 : vector<128x128xf32>
    %c0_36 = arith.constant 0 : index
    %c0_37 = arith.constant 0 : index
    %46 = vector.load %arg15[%c0_36, %c0_37] : memref<128x128xf32, #tpu.memory_space<vmem>>, vector<128x128xf32>
    tpu.vector_store %arg15[%c0_36, %c0_37], %45 {strides = array<i32>} : memref<128x128xf32, #tpu.memory_space<vmem>>, vector<128x128xf32>,
    return
  }
  func.func @transform_0(%arg0: i32) -> (i32, i32) {
    %c0_i32 = arith.constant 0 : i32
    %c0_i32_0 = arith.constant 0 : i32
    return %arg0, %c0_i32 : i32, i32
  }
  func.func @transform_1(%arg0: i32) -> (i32, i32) {
    %c0_i32 = arith.constant 0 : i32
    %c0_i32_0 = arith.constant 0 : i32
    %c0_i32_1 = arith.constant 0 : i32
    return %c0_i32, %c0_i32_0 : i32, i32
  }
  func.func @transform_2(%arg0: i32) -> (i32, i32) {
    %c0_i32 = arith.constant 0 : i32
    %c0_i32_0 = arith.constant 0 : i32
    %c0_i32_1 = arith.constant 0 : i32
    return %c0_i32, %c0_i32_0 : i32, i32
  }
  func.func @transform_3(%arg0: i32) -> (i32, i32) {
    %c0_i32 = arith.constant 0 : i32
    %c0_i32_0 = arith.constant 0 : i32
    %c0_i32_1 = arith.constant 0 : i32
    return %c0_i32, %c0_i32_0 : i32, i32
  }
  func.func @transform_4(%arg0: i32) -> (i32, i32) {
    %c0_i32 = arith.constant 0 : i32
    %c0_i32_0 = arith.constant 0 : i32
    %c0_i32_1 = arith.constant 0 : i32
    return %c0_i32, %c0_i32_0 : i32, i32
  }
  func.func @transform_5(%arg0: i32) -> (i32, i32) {
    %c0_i32 = arith.constant 0 : i32
    %c0_i32_0 = arith.constant 0 : i32
    %c0_i32_1 = arith.constant 0 : i32
    return %c0_i32, %c0_i32_0 : i32, i32
  }
  func.func @transform_6(%arg0: i32) -> (i32, i32) {
    %c0_i32 = arith.constant 0 : i32
    %c0_i32_0 = arith.constant 0 : i32
    %c0_i32_1 = arith.constant 0 : i32
    return %c0_i32, %c0_i32_0 : i32, i32
  }
  func.func @transform_7(%arg0: i32) -> (i32, i32) {
    %c0_i32 = arith.constant 0 : i32
    %c0_i32_0 = arith.constant 0 : i32
    %c0_i32_1 = arith.constant 0 : i32
    return %c0_i32, %c0_i32_0 : i32, i32
  }
  func.func @transform_8(%arg0: i32) -> (i32, i32) {
    %c0_i32 = arith.constant 0 : i32
    %c0_i32_0 = arith.constant 0 : i32
    %c0_i32_1 = arith.constant 0 : i32
    return %c0_i32, %c0_i32_0 : i32, i32
  }
  func.func @transform_9(%arg0: i32) -> (i32, i32) {
    %c0_i32 = arith.constant 0 : i32
    %c0_i32_0 = arith.constant 0 : i32
    %c0_i32_1 = arith.constant 0 : i32
    return %c0_i32, %c0_i32_0 : i32, i32
  }
  func.func @transform_10(%arg0: i32) -> (i32, i32) {
    %c0_i32 = arith.constant 0 : i32
    %c0_i32_0 = arith.constant 0 : i32
    %c0_i32_1 = arith.constant 0 : i32
    return %c0_i32, %c0_i32_0 : i32, i32
  }
  func.func @transform_11(%arg0: i32) -> (i32, i32) {
    %c0_i32 = arith.constant 0 : i32
    %c0_i32_0 = arith.constant 0 : i32
    %c0_i32_1 = arith.constant 0 : i32
    return %c0_i32, %c0_i32_0 : i32, i32
  }
  func.func @transform_12(%arg0: i32) -> (i32, i32) {
    %c0_i32 = arith.constant 0 : i32
    %c0_i32_0 = arith.constant 0 : i32
    %c0_i32_1 = arith.constant 0 : i32
    return %c0_i32, %c0_i32_0 : i32, i32
  }
  func.func @transform_13(%arg0: i32) -> (i32, i32) {
    %c0_i32 = arith.constant 0 : i32
    %c0_i32_0 = arith.constant 0 : i32
    return %arg0, %c0_i32 : i32, i32
  }
  func.func @transform_14(%arg0: i32) -> (i32, i32) {
    %c0_i32 = arith.constant 0 : i32
    %c0_i32_0 = arith.constant 0 : i32
    return %arg0, %c0_i32 : i32, i32
  }
}

</mosaic_0001>

<llo_original>
// kernel: tpu_custom_call.1
$region0: #{tpu_custom_call.1}
  #allocation0 [shape = 'u32[]', space=smem, size = 0x4, offset = 0x4, fixed_abs, tag = 'smem constant byte address 0x4 - core index']
  #allocation1 [shape = 'u32[144,128]{1,0:T(1,128)}', space=vmem, size = 0x12000, scoped, tag = 'internal scratch']
  %s0 = inlined_call_operand.hbm [shape: bf16[256,128], index: 0, kind: input, shape index: {}]
  %s1 = inlined_call_operand.hbm [shape: bf16[128,256], index: 1, kind: input, shape index: {}]
  %s2 = inlined_call_operand.vmem [shape: f32[1,256], index: 2, kind: input, shape index: {}]
  %s3 = inlined_call_operand.hbm [shape: bf16[256,256], index: 3, kind: input, shape index: {}]
  %s4 = inlined_call_operand.vmem [shape: f32[1,256], index: 4, kind: input, shape index: {}]
  %s5 = inlined_call_operand.hbm [shape: bf16[256,128], index: 5, kind: input, shape index: {}]
  %s6 = inlined_call_operand.vmem [shape: f32[1,128], index: 6, kind: input, shape index: {}]
  %s7 = inlined_call_operand.hbm [shape: bf16[128,256], index: 7, kind: input, shape index: {}]
  %s8 = inlined_call_operand.vmem [shape: f32[1,256], index: 8, kind: input, shape index: {}]
  %s9 = inlined_call_operand.hbm [shape: bf16[256,256], index: 9, kind: input, shape index: {}]
  %s10 = inlined_call_operand.vmem [shape: f32[1,256], index: 10, kind: input, shape index: {}]
  %s11 = inlined_call_operand.hbm [shape: bf16[256,128], index: 11, kind: input, shape index: {}]
  %s12 = inlined_call_operand.vmem [shape: f32[1,128], index: 12, kind: input, shape index: {}]
  %s13 = inlined_call_operand.hbm [shape: f32[256,128], index: 13, kind: output, shape index: {0}]
  %s14 = inlined_call_operand.hbm [shape: f32[256,128], index: 14, kind: output, shape index: {1}]
  %15 = xla_tuple %s13, %s14
  %s16 = sld [smem:[#allocation0]]
  $region121: #{tpu_custom_call.1} parent=0
    _
  %s18 = ssub.s32 1, %s16
  %s19 = scalar_select 0, %s18, %s16
  $region1: #{tpu_custom_call.1} parent=0
    #allocation2 [shape = 'u8[65536]{0}', space=vmem, size = 0x10000, scoped, tag = 'input window, operand 0']
    #allocation3 [shape = 's32[2]{0}', space=sflag, size = 0x8, scoped, tag = 'scoped memory for tpu_custom_call.1']
    #allocation4 [shape = 's32[2]{0}', space=sflag, size = 0x8, scoped, tag = 'scoped memory for tpu_custom_call.1']
    #allocation5 [shape = 'u8[65536]{0}', space=vmem, size = 0x10000, scoped, tag = 'input window, operand 1, single buffered']
    #allocation6 [shape = 's32[1]{0}', space=sflag, size = 0x4, scoped, tag = 'scoped memory for tpu_custom_call.1']
    #allocation7 [shape = 'u8[131072]{0}', space=vmem, size = 0x20000, scoped, tag = 'input window, operand 3, single buffered']
    #allocation8 [shape = 'u8[65536]{0}', space=vmem, size = 0x10000, scoped, tag = 'input window, operand 5, single buffered']
    #allocation9 [shape = 's32[1]{0}', space=sflag, size = 0x4, scoped, tag = 'scoped memory for tpu_custom_call.1']
    #allocation10 [shape = 'u8[65536]{0}', space=vmem, size = 0x10000, scoped, tag = 'input window, operand 7, single buffered']
    #allocation11 [shape = 'u8[131072]{0}', space=vmem, size = 0x20000, scoped, tag = 'input window, operand 9, single buffered']
    #allocation12 [shape = 's32[1]{0}', space=sflag, size = 0x4, scoped, tag = 'scoped memory for tpu_custom_call.1']
    #allocation13 [shape = 'u8[65536]{0}', space=vmem, size = 0x10000, scoped, tag = 'input window, operand 11, single buffered']
    #allocation14 [shape = 'u8[131072]{0}', space=vmem, size = 0x20000, scoped, tag = 'output window, operand 0']
    #allocation15 [shape = 'u8[131072]{0}', space=vmem, size = 0x20000, scoped, tag = 'output window, operand 1']
    #allocation16 [shape = 's32[2]{0}', space=sflag, size = 0x8, scoped, tag = 'scoped memory for tpu_custom_call.1']
    %20 = vsyncpa [#allocation3], 0
    %s21 = scalar_lea.sflag [#allocation3], 1
    %22 = vsyncpa %s21, 0
    %23 = vsyncpa [#allocation6], 0
    %24 = vsyncpa [#allocation9], 0
    %25 = vsyncpa [#allocation12], 0
    %26 = vsyncpa [#allocation4], 0
    %s27 = scalar_lea.sflag [#allocation4], 1
    %28 = vsyncpa %s27, 0
    %29 = vsyncpa [#allocation16], 0
    %s30 = scalar_lea.sflag [#allocation16], 1
    %31 = vsyncpa %s30, 0
    loop: start=0, step=1, limit=4
    $region2: #{tpu_custom_call.1} parent=1 // loop_pre_header
      _
    $region3: #{tpu_custom_call.1} parent=1 // loop_header
      %s33 = sphi 0, %s37
      %p34 = scmp.ge.s32.totalorder %s33, 4
      %s43 = sphi 0, %s45
      %s46 = sphi 0, %s43
      %s47 = sphi 0, %s46
      %s63 = sphi 0, %s47
      %s67 = sphi 0, %s67
      %s69 = sphi 0, %s67
      %s70 = sphi 0, %s69
      %s84 = sphi 0, %s70
      %s88 = sphi 0, %s88
      %s90 = sphi 0, %s88
      %s91 = sphi 0, %s90
      %s105 = sphi 0, %s91
      %s109 = sphi 0, %s109
      %s111 = sphi 0, %s109
      %s112 = sphi 0, %s111
      %s126 = sphi 0, %s112
      %s130 = sphi 0, %s130
      %s132 = sphi 0, %s130
      %s133 = sphi 0, %s132
      %s147 = sphi 0, %s133
      %s151 = sphi 0, %s151
      %s153 = sphi 0, %s151
      %s154 = sphi 0, %s153
      %s168 = sphi 0, %s154
      %s172 = sphi 0, %s172
      %s174 = sphi 0, %s172
      %s175 = sphi 0, %s174
      %s189 = sphi 0, %s175
      %s193 = sphi 0, %s193
      %s195 = sphi 0, %s193
      %s196 = sphi 0, %s195
      %s210 = sphi 0, %s196
      %s214 = sphi 0, %s214
      %s216 = sphi 0, %s214
      %s217 = sphi 0, %s216
      %s231 = sphi 0, %s217
      %s235 = sphi 0, %s235
      %s237 = sphi 0, %s235
      %s238 = sphi 0, %s237
      %s252 = sphi 0, %s238
      %s256 = sphi 0, %s256
      %s258 = sphi 0, %s256
      %s259 = sphi 0, %s258
      %s273 = sphi 0, %s259
      %s277 = sphi 0, %s277
      %s279 = sphi 0, %s277
      %s280 = sphi 0, %s279
      %s294 = sphi 0, %s280
      %s298 = sphi 0, %s298
      %s300 = sphi 0, %s298
      %s301 = sphi 0, %s300
      %s315 = sphi 0, %s301
      %s321 = sphi 0, %s323
      %s324 = sphi 0, %s321
      %s325 = sphi 0, %s324
      %s341 = sphi 0, %s325
      %s347 = sphi 0, %s349
      %s350 = sphi 0, %s347
      %s351 = sphi 0, %s350
      %s367 = sphi 0, %s351
    $region4: #{tpu_custom_call.1} parent=1 // loop_header_branch
      %36 = sbr.rel (%p34) target = $region8
    $region5: #{tpu_custom_call.1} parent=1 // loop_body
      %s38 = ssub.s32 %s33, 1
      %s39 = ssub.s32 %s33, 2
      %s40 = sadd.s32 %s33, 1
      %s41 = ssub.s32 %s33, %s40
      %p42 = scmp.eq.s32.totalorder %s41, 0
      %s44 = sadd.s32 %s43, 1
      %s45 = scalar_select %p42, %s43, %s44
      %p48 = pneg %p42
      %p49 = scmp.eq.s32.totalorder %s33, 1
      %p50 = por %p48, %p49
      %p51 = scmp.ne.s32.totalorder %s43, %s46
      %p52 = scmp.eq.s32.totalorder %s33, 0
      %p53 = por %p51, %p52
      %p54 = scmp.ne.s32.totalorder %s43, %s46
      %p55 = scmp.eq.s32.totalorder %s38, 1
      %p56 = por %p54, %p55
      %p57 = scmp.ne.s32.totalorder %s46, %s47
      %p58 = scmp.eq.s32.totalorder %s38, 0
      %p59 = por %p57, %p58
      %p60 = scmp.ne.s32.totalorder %s46, %s47
      %p61 = scmp.eq.s32.totalorder %s39, 1
      %p62 = por %p60, %p61
      %p64 = scmp.ne.s32.totalorder %s47, %s63
      %p65 = scmp.eq.s32.totalorder %s39, 0
      %p66 = por %p64, %p65
      %s68 = sadd.s32 %s67, 1
      %p71 = scmp.eq.s32.totalorder %s33, 1
      %p72 = scmp.ne.s32.totalorder %s67, %s69
      %p73 = scmp.eq.s32.totalorder %s33, 0
      %p74 = por %p72, %p73
      %p75 = scmp.ne.s32.totalorder %s67, %s69
      %p76 = scmp.eq.s32.totalorder %s38, 1
      %p77 = por %p75, %p76
      %p78 = scmp.ne.s32.totalorder %s69, %s70
      %p79 = scmp.eq.s32.totalorder %s38, 0
      %p80 = por %p78, %p79
      %p81 = scmp.ne.s32.totalorder %s69, %s70
      %p82 = scmp.eq.s32.totalorder %s39, 1
      %p83 = por %p81, %p82
      %p85 = scmp.ne.s32.totalorder %s70, %s84
      %p86 = scmp.eq.s32.totalorder %s39, 0
      %p87 = por %p85, %p86
      %s89 = sadd.s32 %s88, 1
      %p92 = scmp.eq.s32.totalorder %s33, 1
      %p93 = scmp.ne.s32.totalorder %s88, %s90
      %p94 = scmp.eq.s32.totalorder %s33, 0
      %p95 = por %p93, %p94
      %p96 = scmp.ne.s32.totalorder %s88, %s90
      %p97 = scmp.eq.s32.totalorder %s38, 1
      %p98 = por %p96, %p97
      %p99 = scmp.ne.s32.totalorder %s90, %s91
      %p100 = scmp.eq.s32.totalorder %s38, 0
      %p101 = por %p99, %p100
      %p102 = scmp.ne.s32.totalorder %s90, %s91
      %p103 = scmp.eq.s32.totalorder %s39, 1
      %p104 = por %p102, %p103
      %p106 = scmp.ne.s32.totalorder %s91, %s105
      %p107 = scmp.eq.s32.totalorder %s39, 0
      %p108 = por %p106, %p107
      %s110 = sadd.s32 %s109, 1
      %p113 = scmp.eq.s32.totalorder %s33, 1
      %p114 = scmp.ne.s32.totalorder %s109, %s111
      %p115 = scmp.eq.s32.totalorder %s33, 0
      %p116 = por %p114, %p115
      %p117 = scmp.ne.s32.totalorder %s109, %s111
      %p118 = scmp.eq.s32.totalorder %s38, 1
      %p119 = por %p117, %p118
      %p120 = scmp.ne.s32.totalorder %s111, %s112
      %p121 = scmp.eq.s32.totalorder %s38, 0
      %p122 = por %p120, %p121
      %p123 = scmp.ne.s32.totalorder %s111, %s112
      %p124 = scmp.eq.s32.totalorder %s39, 1
      %p125 = por %p123, %p124
      %p127 = scmp.ne.s32.totalorder %s112, %s126
      %p128 = scmp.eq.s32.totalorder %s39, 0
      %p129 = por %p127, %p128
      %s131 = sadd.s32 %s130, 1
      %p134 = scmp.eq.s32.totalorder %s33, 1
      %p135 = scmp.ne.s32.totalorder %s130, %s132
      %p136 = scmp.eq.s32.totalorder %s33, 0
      %p137 = por %p135, %p136
      %p138 = scmp.ne.s32.totalorder %s130, %s132
      %p139 = scmp.eq.s32.totalorder %s38, 1
      %p140 = por %p138, %p139
      %p141 = scmp.ne.s32.totalorder %s132, %s133
      %p142 = scmp.eq.s32.totalorder %s38, 0
      %p143 = por %p141, %p142
      %p144 = scmp.ne.s32.totalorder %s132, %s133
      %p145 = scmp.eq.s32.totalorder %s39, 1
      %p146 = por %p144, %p145
      %p148 = scmp.ne.s32.totalorder %s133, %s147
      %p149 = scmp.eq.s32.totalorder %s39, 0
      %p150 = por %p148, %p149
      %s152 = sadd.s32 %s151, 1
      %p155 = scmp.eq.s32.totalorder %s33, 1
      %p156 = scmp.ne.s32.totalorder %s151, %s153
      %p157 = scmp.eq.s32.totalorder %s33, 0
      %p158 = por %p156, %p157
      %p159 = scmp.ne.s32.totalorder %s151, %s153
      %p160 = scmp.eq.s32.totalorder %s38, 1
      %p161 = por %p159, %p160
      %p162 = scmp.ne.s32.totalorder %s153, %s154
      %p163 = scmp.eq.s32.totalorder %s38, 0
      %p164 = por %p162, %p163
      %p165 = scmp.ne.s32.totalorder %s153, %s154
      %p166 = scmp.eq.s32.totalorder %s39, 1
      %p167 = por %p165, %p166
      %p169 = scmp.ne.s32.totalorder %s154, %s168
      %p170 = scmp.eq.s32.totalorder %s39, 0
      %p171 = por %p169, %p170
      %s173 = sadd.s32 %s172, 1
      %p176 = scmp.eq.s32.totalorder %s33, 1
      %p177 = scmp.ne.s32.totalorder %s172, %s174
      %p178 = scmp.eq.s32.totalorder %s33, 0
      %p179 = por %p177, %p178
      %p180 = scmp.ne.s32.totalorder %s172, %s174
      %p181 = scmp.eq.s32.totalorder %s38, 1
      %p182 = por %p180, %p181
      %p183 = scmp.ne.s32.totalorder %s174, %s175
      %p184 = scmp.eq.s32.totalorder %s38, 0
      %p185 = por %p183, %p184
      %p186 = scmp.ne.s32.totalorder %s174, %s175
      %p187 = scmp.eq.s32.totalorder %s39, 1
      %p188 = por %p186, %p187
      %p190 = scmp.ne.s32.totalorder %s175, %s189
      %p191 = scmp.eq.s32.totalorder %s39, 0
      %p192 = por %p190, %p191
      %s194 = sadd.s32 %s193, 1
      %p197 = scmp.eq.s32.totalorder %s33, 1
      %p198 = scmp.ne.s32.totalorder %s193, %s195
      %p199 = scmp.eq.s32.totalorder %s33, 0
      %p200 = por %p198, %p199
      %p201 = scmp.ne.s32.totalorder %s193, %s195
      %p202 = scmp.eq.s32.totalorder %s38, 1
      %p203 = por %p201, %p202
      %p204 = scmp.ne.s32.totalorder %s195, %s196
      %p205 = scmp.eq.s32.totalorder %s38, 0
      %p206 = por %p204, %p205
      %p207 = scmp.ne.s32.totalorder %s195, %s196
      %p208 = scmp.eq.s32.totalorder %s39, 1
      %p209 = por %p207, %p208
      %p211 = scmp.ne.s32.totalorder %s196, %s210
      %p212 = scmp.eq.s32.totalorder %s39, 0
      %p213 = por %p211, %p212
      %s215 = sadd.s32 %s214, 1
      %p218 = scmp.eq.s32.totalorder %s33, 1
      %p219 = scmp.ne.s32.totalorder %s214, %s216
      %p220 = scmp.eq.s32.totalorder %s33, 0
      %p221 = por %p219, %p220
      %p222 = scmp.ne.s32.totalorder %s214, %s216
      %p223 = scmp.eq.s32.totalorder %s38, 1
      %p224 = por %p222, %p223
      %p225 = scmp.ne.s32.totalorder %s216, %s217
      %p226 = scmp.eq.s32.totalorder %s38, 0
      %p227 = por %p225, %p226
      %p228 = scmp.ne.s32.totalorder %s216, %s217
      %p229 = scmp.eq.s32.totalorder %s39, 1
      %p230 = por %p228, %p229
      %p232 = scmp.ne.s32.totalorder %s217, %s231
      %p233 = scmp.eq.s32.totalorder %s39, 0
      %p234 = por %p232, %p233
      %s236 = sadd.s32 %s235, 1
      %p239 = scmp.eq.s32.totalorder %s33, 1
      %p240 = scmp.ne.s32.totalorder %s235, %s237
      %p241 = scmp.eq.s32.totalorder %s33, 0
      %p242 = por %p240, %p241
      %p243 = scmp.ne.s32.totalorder %s235, %s237
      %p244 = scmp.eq.s32.totalorder %s38, 1
      %p245 = por %p243, %p244
      %p246 = scmp.ne.s32.totalorder %s237, %s238
      %p247 = scmp.eq.s32.totalorder %s38, 0
      %p248 = por %p246, %p247
      %p249 = scmp.ne.s32.totalorder %s237, %s238
      %p250 = scmp.eq.s32.totalorder %s39, 1
      %p251 = por %p249, %p250
      %p253 = scmp.ne.s32.totalorder %s238, %s252
      %p254 = scmp.eq.s32.totalorder %s39, 0
      %p255 = por %p253, %p254
      %s257 = sadd.s32 %s256, 1
      %p260 = scmp.eq.s32.totalorder %s33, 1
      %p261 = scmp.ne.s32.totalorder %s256, %s258
      %p262 = scmp.eq.s32.totalorder %s33, 0
      %p263 = por %p261, %p262
      %p264 = scmp.ne.s32.totalorder %s256, %s258
      %p265 = scmp.eq.s32.totalorder %s38, 1
      %p266 = por %p264, %p265
      %p267 = scmp.ne.s32.totalorder %s258, %s259
      %p268 = scmp.eq.s32.totalorder %s38, 0
      %p269 = por %p267, %p268
      %p270 = scmp.ne.s32.totalorder %s258, %s259
      %p271 = scmp.eq.s32.totalorder %s39, 1
      %p272 = por %p270, %p271
      %p274 = scmp.ne.s32.totalorder %s259, %s273
      %p275 = scmp.eq.s32.totalorder %s39, 0
      %p276 = por %p274, %p275
      %s278 = sadd.s32 %s277, 1
      %p281 = scmp.eq.s32.totalorder %s33, 1
      %p282 = scmp.ne.s32.totalorder %s277, %s279
      %p283 = scmp.eq.s32.totalorder %s33, 0
      %p284 = por %p282, %p283
      %p285 = scmp.ne.s32.totalorder %s277, %s279
      %p286 = scmp.eq.s32.totalorder %s38, 1
      %p287 = por %p285, %p286
      %p288 = scmp.ne.s32.totalorder %s279, %s280
      %p289 = scmp.eq.s32.totalorder %s38, 0
      %p290 = por %p288, %p289
      %p291 = scmp.ne.s32.totalorder %s279, %s280
      %p292 = scmp.eq.s32.totalorder %s39, 1
      %p293 = por %p291, %p292
      %p295 = scmp.ne.s32.totalorder %s280, %s294
      %p296 = scmp.eq.s32.totalorder %s39, 0
      %p297 = por %p295, %p296
      %s299 = sadd.s32 %s298, 1
      %p302 = scmp.eq.s32.totalorder %s33, 1
      %p303 = scmp.ne.s32.totalorder %s298, %s300
      %p304 = scmp.eq.s32.totalorder %s33, 0
      %p305 = por %p303, %p304
      %p306 = scmp.ne.s32.totalorder %s298, %s300
      %p307 = scmp.eq.s32.totalorder %s38, 1
      %p308 = por %p306, %p307
      %p309 = scmp.ne.s32.totalorder %s300, %s301
      %p310 = scmp.eq.s32.totalorder %s38, 0
      %p311 = por %p309, %p310
      %p312 = scmp.ne.s32.totalorder %s300, %s301
      %p313 = scmp.eq.s32.totalorder %s39, 1
      %p314 = por %p312, %p313
      %p316 = scmp.ne.s32.totalorder %s301, %s315
      %p317 = scmp.eq.s32.totalorder %s39, 0
      %p318 = por %p316, %p317
      %s319 = ssub.s32 %s33, %s40
      %p320 = scmp.eq.s32.totalorder %s319, 0
      %s322 = sadd.s32 %s321, 1
      %s323 = scalar_select %p320, %s321, %s322
      %p326 = pneg %p320
      %p327 = scmp.eq.s32.totalorder %s33, 1
      %p328 = por %p326, %p327
      %p329 = scmp.ne.s32.totalorder %s321, %s324
      %p330 = scmp.eq.s32.totalorder %s33, 0
      %p331 = por %p329, %p330
      %p332 = scmp.ne.s32.totalorder %s321, %s324
      %p333 = scmp.eq.s32.totalorder %s38, 1
      %p334 = por %p332, %p333
      %p335 = scmp.ne.s32.totalorder %s324, %s325
      %p336 = scmp.eq.s32.totalorder %s38, 0
      %p337 = por %p335, %p336
      %p338 = scmp.ne.s32.totalorder %s324, %s325
      %p339 = scmp.eq.s32.totalorder %s39, 1
      %p340 = por %p338, %p339
      %p342 = scmp.ne.s32.totalorder %s325, %s341
      %p343 = scmp.eq.s32.totalorder %s39, 0
      %p344 = por %p342, %p343
      %s345 = ssub.s32 %s33, %s40
      %p346 = scmp.eq.s32.totalorder %s345, 0
      %s348 = sadd.s32 %s347, 1
      %s349 = scalar_select %p346, %s347, %s348
      %p352 = pneg %p346
      %p353 = scmp.eq.s32.totalorder %s33, 1
      %p354 = por %p352, %p353
      %p355 = scmp.ne.s32.totalorder %s347, %s350
      %p356 = scmp.eq.s32.totalorder %s33, 0
      %p357 = por %p355, %p356
      %p358 = scmp.ne.s32.totalorder %s347, %s350
      %p359 = scmp.eq.s32.totalorder %s38, 1
      %p360 = por %p358, %p359
      %p361 = scmp.ne.s32.totalorder %s350, %s351
      %p362 = scmp.eq.s32.totalorder %s38, 0
      %p363 = por %p361, %p362
      %p364 = scmp.ne.s32.totalorder %s350, %s351
      %p365 = scmp.eq.s32.totalorder %s39, 1
      %p366 = por %p364, %p365
      %p368 = scmp.ne.s32.totalorder %s351, %s367
      %p369 = scmp.eq.s32.totalorder %s39, 0
      %p370 = por %p368, %p369
      %p371 = scmp.le.s32.totalorder 1, %s33
      %p372 = scmp.lt.s32.totalorder %s33, 3
      %p373 = pnand %p371, %p372
      %p374 = pneg %p373
      // Predicated region
      $region9: #{tpu_custom_call.1} parent=5 // pred_check
        _
      $region10: #{tpu_custom_call.1} parent=5 // pred_check_branch
        %376 = sbr.rel (%p373) target = $region12
      $region11: #{tpu_custom_call.1} parent=5 // pred_region
        %s377 = ssub.s32 %s33, 1
        // Predicated region
        $region13: #{tpu_custom_call.1} parent=11 // pred_check
          %p378 = pneg %p80
        $region14: #{tpu_custom_call.1} parent=11 // pred_check_branch
          %380 = sbr.rel (%p378) target = $region16
        $region15: #{tpu_custom_call.1} parent=11 // pred_region
          %s382 = ssub.s32 2048, 2048
          %383 = vsyncadd [#allocation6], %s382
          %s384 = sshll.u32 [#allocation5], 4
          %s385 = int_to_ptr.vmem [resolvable:$true] %s384
          %390 = dma.hbm_to_vmem [thread:$0]  %s1, 2048, %s385, [#allocation6], 128, 128, 8
        $region16: #{tpu_custom_call.1} parent=11 // pred_fallthru
          _
        // Predicated region
        $region17: #{tpu_custom_call.1} parent=11 // pred_check
          %p391 = pneg %p101
        $region18: #{tpu_custom_call.1} parent=11 // pred_check_branch
          %393 = sbr.rel (%p391) target = $region20
        $region19: #{tpu_custom_call.1} parent=11 // pred_region
          _
        $region20: #{tpu_custom_call.1} parent=11 // pred_fallthru
          _
        // Predicated region
        $region21: #{tpu_custom_call.1} parent=11 // pred_check
          %p394 = pneg %p122
        $region22: #{tpu_custom_call.1} parent=11 // pred_check_branch
          %396 = sbr.rel (%p394) target = $region24
        $region23: #{tpu_custom_call.1} parent=11 // pred_region
          %s398 = ssub.s32 4096, 4096
          %399 = vsyncadd [#allocation6], %s398
          %s400 = sshll.u32 [#allocation7], 4
          %s401 = int_to_ptr.vmem [resolvable:$true] %s400
          %406 = dma.hbm_to_vmem [thread:$0]  %s3, 4096, %s401, [#allocation6], 128, 128, 8
        $region24: #{tpu_custom_call.1} parent=11 // pred_fallthru
          _
        // Predicated region
        $region25: #{tpu_custom_call.1} parent=11 // pred_check
          %p407 = pneg %p143
        $region26: #{tpu_custom_call.1} parent=11 // pred_check_branch
          %409 = sbr.rel (%p407) target = $region28
        $region27: #{tpu_custom_call.1} parent=11 // pred_region
          _
        $region28: #{tpu_custom_call.1} parent=11 // pred_fallthru
          _
        // Predicated region
        $region29: #{tpu_custom_call.1} parent=11 // pred_check
          %p410 = pneg %p164
        $region30: #{tpu_custom_call.1} parent=11 // pred_check_branch
          %412 = sbr.rel (%p410) target = $region32
        $region31: #{tpu_custom_call.1} parent=11 // pred_region
          %s414 = ssub.s32 2048, 2048
          %415 = vsyncadd [#allocation9], %s414
          %s416 = sshll.u32 [#allocation8], 4
          %s417 = int_to_ptr.vmem [resolvable:$true] %s416
          %422 = dma.hbm_to_vmem [thread:$0]  %s5, 2048, %s417, [#allocation9], 64, 64, 4
        $region32: #{tpu_custom_call.1} parent=11 // pred_fallthru
          _
        // Predicated region
        $region33: #{tpu_custom_call.1} parent=11 // pred_check
          %p423 = pneg %p185
        $region34: #{tpu_custom_call.1} parent=11 // pred_check_branch
          %425 = sbr.rel (%p423) target = $region36
        $region35: #{tpu_custom_call.1} parent=11 // pred_region
          _
        $region36: #{tpu_custom_call.1} parent=11 // pred_fallthru
          _
        // Predicated region
        $region37: #{tpu_custom_call.1} parent=11 // pred_check
          %p426 = pneg %p206
        $region38: #{tpu_custom_call.1} parent=11 // pred_check_branch
          %428 = sbr.rel (%p426) target = $region40
        $region39: #{tpu_custom_call.1} parent=11 // pred_region
          %s430 = ssub.s32 2048, 2048
          %431 = vsyncadd [#allocation9], %s430
          %s432 = sshll.u32 [#allocation10], 4
          %s433 = int_to_ptr.vmem [resolvable:$true] %s432
          %438 = dma.hbm_to_vmem [thread:$0]  %s7, 2048, %s433, [#allocation9], 128, 128, 8
        $region40: #{tpu_custom_call.1} parent=11 // pred_fallthru
          _
        // Predicated region
        $region41: #{tpu_custom_call.1} parent=11 // pred_check
          %p439 = pneg %p227
        $region42: #{tpu_custom_call.1} parent=11 // pred_check_branch
          %441 = sbr.rel (%p439) target = $region44
        $region43: #{tpu_custom_call.1} parent=11 // pred_region
          _
        $region44: #{tpu_custom_call.1} parent=11 // pred_fallthru
          _
        // Predicated region
        $region45: #{tpu_custom_call.1} parent=11 // pred_check
          %p442 = pneg %p248
        $region46: #{tpu_custom_call.1} parent=11 // pred_check_branch
          %444 = sbr.rel (%p442) target = $region48
        $region47: #{tpu_custom_call.1} parent=11 // pred_region
          %s446 = ssub.s32 4096, 4096
          %447 = vsyncadd [#allocation12], %s446
          %s448 = sshll.u32 [#allocation11], 4
          %s449 = int_to_ptr.vmem [resolvable:$true] %s448
          %454 = dma.hbm_to_vmem [thread:$0]  %s9, 4096, %s449, [#allocation12], 128, 128, 8
        $region48: #{tpu_custom_call.1} parent=11 // pred_fallthru
          _
        // Predicated region
        $region49: #{tpu_custom_call.1} parent=11 // pred_check
          %p455 = pneg %p269
        $region50: #{tpu_custom_call.1} parent=11 // pred_check_branch
          %457 = sbr.rel (%p455) target = $region52
        $region51: #{tpu_custom_call.1} parent=11 // pred_region
          _
        $region52: #{tpu_custom_call.1} parent=11 // pred_fallthru
          _
        // Predicated region
        $region53: #{tpu_custom_call.1} parent=11 // pred_check
          %p458 = pneg %p290
        $region54: #{tpu_custom_call.1} parent=11 // pred_check_branch
          %460 = sbr.rel (%p458) target = $region56
        $region55: #{tpu_custom_call.1} parent=11 // pred_region
          %s462 = ssub.s32 2048, 2048
          %463 = vsyncadd [#allocation12], %s462
          %s464 = sshll.u32 [#allocation13], 4
          %s465 = int_to_ptr.vmem [resolvable:$true] %s464
          %470 = dma.hbm_to_vmem [thread:$0]  %s11, 2048, %s465, [#allocation12], 64, 64, 4
        $region56: #{tpu_custom_call.1} parent=11 // pred_fallthru
          _
        // Predicated region
        $region57: #{tpu_custom_call.1} parent=11 // pred_check
          %p471 = pneg %p311
        $region58: #{tpu_custom_call.1} parent=11 // pred_check_branch
          %473 = sbr.rel (%p471) target = $region60
        $region59: #{tpu_custom_call.1} parent=11 // pred_region
          _
        $region60: #{tpu_custom_call.1} parent=11 // pred_fallthru
          _
      $region12: #{tpu_custom_call.1} parent=5 // pred_fallthru
        _
      %p474 = scmp.lt.s32.totalorder %s33, 2
      // Predicated region
      $region61: #{tpu_custom_call.1} parent=5 // pred_check
        %p475 = pneg %p474
      $region62: #{tpu_custom_call.1} parent=5 // pred_check_branch
        %477 = sbr.rel (%p475) target = $region64
      $region63: #{tpu_custom_call.1} parent=5 // pred_region
        // Predicated region
        $region65: #{tpu_custom_call.1} parent=63 // pred_check
          %p478 = pneg %p53
        $region66: #{tpu_custom_call.1} parent=63 // pred_check_branch
          %480 = sbr.rel (%p478) target = $region68
        $region67: #{tpu_custom_call.1} parent=63 // pred_region
          %s481 = sand.u32 %s43, 1
          %s482 = scalar_lea.sflag [#allocation3], %s481
          %s483 = sand.u32 %s43, 1
          %s484 = smul.addr %s483, 64
          %s485 = scalar_lea.vmem [#allocation2], %s484
          %s486 = smul.u32 16, %s33
          %s488 = ssub.s32 1024, 1024
          %489 = vsyncadd %s482, %s488
          %s490 = smul.addr %s486, 64
          %s491 = scalar_lea.hbm %s0, %s490
          %s492 = sshll.u32 %s485, 4
          %s493 = int_to_ptr.vmem [resolvable:$true] %s492
          %498 = dma.hbm_to_vmem [thread:$0]  %s491, 1024, %s493, %s482, 64, 64, 4
        $region68: #{tpu_custom_call.1} parent=63 // pred_fallthru
          _
      $region64: #{tpu_custom_call.1} parent=5 // pred_fallthru
        _
      %p499 = scmp.le.s32.totalorder 1, %s33
      %p500 = scmp.lt.s32.totalorder %s33, 3
      %p501 = pnand %p499, %p500
      %p502 = pneg %p501
      // Predicated region
      $region69: #{tpu_custom_call.1} parent=5 // pred_check
        _
      $region70: #{tpu_custom_call.1} parent=5 // pred_check_branch
        %504 = sbr.rel (%p501) target = $region72
      $region71: #{tpu_custom_call.1} parent=5 // pred_region
        %s505 = ssub.s32 %s33, 1
        %s506 = sand.u32 %s46, 1
        %s507 = scalar_lea.sflag [#allocation3], %s506
        %s508 = sand.u32 %s46, 1
        %s509 = smul.addr %s508, 64
        %s510 = scalar_lea.vmem [#allocation2], %s509
        // Predicated region
        $region73: #{tpu_custom_call.1} parent=71 // pred_check
          %p511 = pneg %p59
        $region74: #{tpu_custom_call.1} parent=71 // pred_check_branch
          %513 = sbr.rel (%p511) target = $region76
        $region75: #{tpu_custom_call.1} parent=71 // pred_region
          %514 = dma.done %s507, 1024
        $region76: #{tpu_custom_call.1} parent=71 // pred_fallthru
          _
        // Predicated region
        $region77: #{tpu_custom_call.1} parent=71 // pred_check
          %p515 = pneg %p80
        $region78: #{tpu_custom_call.1} parent=71 // pred_check_branch
          %517 = sbr.rel (%p515) target = $region80
        $region79: #{tpu_custom_call.1} parent=71 // pred_region
          %518 = dma.done [#allocation6], 2048
        $region80: #{tpu_custom_call.1} parent=71 // pred_fallthru
          _
        // Predicated region
        $region81: #{tpu_custom_call.1} parent=71 // pred_check
          %p519 = pneg %p122
        $region82: #{tpu_custom_call.1} parent=71 // pred_check_branch
          %521 = sbr.rel (%p519) target = $region84
        $region83: #{tpu_custom_call.1} parent=71 // pred_region
          %522 = dma.done [#allocation6], 4096
        $region84: #{tpu_custom_call.1} parent=71 // pred_fallthru
          _
        // Predicated region
        $region85: #{tpu_custom_call.1} parent=71 // pred_check
          %p523 = pneg %p164
        $region86: #{tpu_custom_call.1} parent=71 // pred_check_branch
          %525 = sbr.rel (%p523) target = $region88
        $region87: #{tpu_custom_call.1} parent=71 // pred_region
          %526 = dma.done [#allocation9], 2048
        $region88: #{tpu_custom_call.1} parent=71 // pred_fallthru
          _
        // Predicated region
        $region89: #{tpu_custom_call.1} parent=71 // pred_check
          %p527 = pneg %p206
        $region90: #{tpu_custom_call.1} parent=71 // pred_check_branch
          %529 = sbr.rel (%p527) target = $region92
        $region91: #{tpu_custom_call.1} parent=71 // pred_region
          %530 = dma.done [#allocation9], 2048
        $region92: #{tpu_custom_call.1} parent=71 // pred_fallthru
          _
        // Predicated region
        $region93: #{tpu_custom_call.1} parent=71 // pred_check
          %p531 = pneg %p248
        $region94: #{tpu_custom_call.1} parent=71 // pred_check_branch
          %533 = sbr.rel (%p531) target = $region96
        $region95: #{tpu_custom_call.1} parent=71 // pred_region
          %534 = dma.done [#allocation12], 4096
        $region96: #{tpu_custom_call.1} parent=71 // pred_fallthru
          _
        // Predicated region
        $region97: #{tpu_custom_call.1} parent=71 // pred_check
          %p535 = pneg %p290
        $region98: #{tpu_custom_call.1} parent=71 // pred_check_branch
          %537 = sbr.rel (%p535) target = $region100
        $region99: #{tpu_custom_call.1} parent=71 // pred_region
          %538 = dma.done [#allocation12], 2048
        $region100: #{tpu_custom_call.1} parent=71 // pred_fallthru
          _
        %s539 = sand.u32 %s46, 1
        %s540 = scalar_lea.sflag [#allocation3], %s539
        %s541 = sand.u32 %s46, 1
        %s542 = smul.addr %s541, 64
        %s543 = scalar_lea.vmem [#allocation2], %s542
        %p544 = pneg %p59
        %p545 = pneg %p56
        %p546 = pneg %p80
        %p547 = pneg %p77
        %p548 = pneg %p101
        %p549 = pneg %p98
        %p550 = pneg %p122
        %p551 = pneg %p119
        %p552 = pneg %p143
        %p553 = pneg %p140
        %p554 = pneg %p164
        %p555 = pneg %p161
        %p556 = pneg %p185
        %p557 = pneg %p182
        %p558 = pneg %p206
        %p559 = pneg %p203
        %p560 = pneg %p227
        %p561 = pneg %p224
        %p562 = pneg %p248
        %p563 = pneg %p245
        %p564 = pneg %p269
        %p565 = pneg %p266
        %p566 = pneg %p290
        %p567 = pneg %p287
        %p568 = pneg %p311
        %p569 = pneg %p308
        %p570 = pneg %p337
        %p571 = pneg %p334
        %s572 = sand.u32 %s324, 1
        %s573 = scalar_lea.sflag [#allocation4], %s572
        %s574 = sand.u32 %s324, 1
        %s575 = smul.addr %s574, 128
        %s576 = scalar_lea.vmem [#allocation14], %s575
        %p577 = pneg %p363
        %p578 = pneg %p360
        %s579 = sand.u32 %s350, 1
        %s580 = scalar_lea.sflag [#allocation16], %s579
        %s581 = sand.u32 %s350, 1
        %s582 = smul.addr %s581, 128
        %s583 = scalar_lea.vmem [#allocation15], %s582
        %s584 = smul.u32 16, %s38
        %s585 = smul.u32 16, %s38
        %s586 = smul.u32 16, %s38
        %v588 = vld [vmem:[%s510] sm:$0xf]
        %v589 = vld [vmem:[%s510 + $0x4] sm:$0xf]
        %v590 = vld [vmem:[%s510 + $0x8] sm:$0xf]
        %v591 = vld [vmem:[%s510 + $0xc] sm:$0xf]
        %v592 = vld [vmem:[%s510 + $0x10] sm:$0xf]
        %v593 = vld [vmem:[%s510 + $0x14] sm:$0xf]
        %v594 = vld [vmem:[%s510 + $0x18] sm:$0xf]
        %v595 = vld [vmem:[%s510 + $0x1c] sm:$0xf]
        %v596 = vld [vmem:[%s510 + $0x20] sm:$0xf]
        %v597 = vld [vmem:[%s510 + $0x24] sm:$0xf]
        %v598 = vld [vmem:[%s510 + $0x28] sm:$0xf]
        %v599 = vld [vmem:[%s510 + $0x2c] sm:$0xf]
        %v600 = vld [vmem:[%s510 + $0x30] sm:$0xf]
        %v601 = vld [vmem:[%s510 + $0x34] sm:$0xf]
        %v602 = vld [vmem:[%s510 + $0x38] sm:$0xf]
        %v603 = vld [vmem:[%s510 + $0x3c] sm:$0xf]
        %v604 = vld [vmem:[#allocation5] sm:$0xff]
        %v605 = vld [vmem:[#allocation5 + $0x8] sm:$0xff]
        %v606 = vld [vmem:[#allocation5 + $0x10] sm:$0xff]
        %v607 = vld [vmem:[#allocation5 + $0x18] sm:$0xff]
        %v608 = vld [vmem:[#allocation5 + $0x20] sm:$0xff]
        %v609 = vld [vmem:[#allocation5 + $0x28] sm:$0xff]
        %v610 = vld [vmem:[#allocation5 + $0x30] sm:$0xff]
        %v611 = vld [vmem:[#allocation5 + $0x38] sm:$0xff]
        %v612 = vld [vmem:[#allocation5 + $0x40] sm:$0xff]
        %v613 = vld [vmem:[#allocation5 + $0x48] sm:$0xff]
        %v614 = vld [vmem:[#allocation5 + $0x50] sm:$0xff]
        %v615 = vld [vmem:[#allocation5 + $0x58] sm:$0xff]
        %v616 = vld [vmem:[#allocation5 + $0x60] sm:$0xff]
        %v617 = vld [vmem:[#allocation5 + $0x68] sm:$0xff]
        %v618 = vld [vmem:[#allocation5 + $0x70] sm:$0xff]
        %v619 = vld [vmem:[#allocation5 + $0x78] sm:$0xff]
        %v620 = vld [vmem:[%s2] sm:$0x3]
        %v622 = vlaneseq
        %v623 = vshrl.u32 %v622, 7
        %v624 = vsub.s32 0, %v623
        %v625 = vrot.slane %v620, %v624
        %v626 = vlaneseq
        %v627 = vshrl.u32 %v626, 7
        %v628 = vsub.s32 1, %v627
        %v629 = vrot.slane %v620, %v628
        %v648 = vunpack.c.l.b16 %v588
        %v649 = vunpack.c.l.b16 %v589
        %v650 = vunpack.c.l.b16 %v590
        %v651 = vunpack.c.l.b16 %v591
        %v652 = vunpack.c.l.b16 %v592
        %v653 = vunpack.c.l.b16 %v593
        %v654 = vunpack.c.l.b16 %v594
        %v655 = vunpack.c.l.b16 %v595
        %v656 = vunpack.c.l.b16 %v596
        %v657 = vunpack.c.l.b16 %v597
        %v658 = vunpack.c.l.b16 %v598
        %v659 = vunpack.c.l.b16 %v599
        %v660 = vunpack.c.l.b16 %v600
        %v661 = vunpack.c.l.b16 %v601
        %v662 = vunpack.c.l.b16 %v602
        %v663 = vunpack.c.l.b16 %v603
        %v664 = vpack.c.b16 %v649, %v648
        %v665 = vpack.c.b16 %v651, %v650
        %v666 = vpack.c.b16 %v653, %v652
        %v667 = vpack.c.b16 %v655, %v654
        %v668 = vpack.c.b16 %v657, %v656
        %v669 = vpack.c.b16 %v659, %v658
        %v670 = vpack.c.b16 %v661, %v660
        %v671 = vpack.c.b16 %v663, %v662
        %v696 = vunpack.c.l.b16 %v604
        %v697 = vunpack.c.h.b16 %v604
        %v698 = vunpack.c.l.b16 %v605
        %v699 = vunpack.c.h.b16 %v605
        %v700 = vunpack.c.l.b16 %v606
        %v701 = vunpack.c.h.b16 %v606
        %v702 = vunpack.c.l.b16 %v607
        %v703 = vunpack.c.h.b16 %v607
        %v704 = vunpack.c.l.b16 %v608
        %v705 = vunpack.c.h.b16 %v608
        %v706 = vunpack.c.l.b16 %v609
        %v707 = vunpack.c.h.b16 %v609
        %v708 = vunpack.c.l.b16 %v610
        %v709 = vunpack.c.h.b16 %v610
        %v710 = vunpack.c.l.b16 %v611
        %v711 = vunpack.c.h.b16 %v611
        %v712 = vunpack.c.l.b16 %v612
        %v713 = vunpack.c.h.b16 %v612
        %v714 = vunpack.c.l.b16 %v613
        %v715 = vunpack.c.h.b16 %v613
        %v716 = vunpack.c.l.b16 %v614
        %v717 = vunpack.c.h.b16 %v614
        %v718 = vunpack.c.l.b16 %v615
        %v719 = vunpack.c.h.b16 %v615
        %v720 = vunpack.c.l.b16 %v616
        %v721 = vunpack.c.h.b16 %v616
        %v722 = vunpack.c.l.b16 %v617
        %v723 = vunpack.c.h.b16 %v617
        %v724 = vunpack.c.l.b16 %v618
        %v725 = vunpack.c.h.b16 %v618
        %v726 = vunpack.c.l.b16 %v619
        %v727 = vunpack.c.h.b16 %v619
        %v728 = vpack.c.b16 %v698, %v696
        %v729 = vpack.c.b16 %v699, %v697
        %v730 = vpack.c.b16 %v702, %v700
        %v731 = vpack.c.b16 %v703, %v701
        %v732 = vpack.c.b16 %v706, %v704
        %v733 = vpack.c.b16 %v707, %v705
        %v734 = vpack.c.b16 %v710, %v708
        %v735 = vpack.c.b16 %v711, %v709
        %v736 = vpack.c.b16 %v714, %v712
        %v737 = vpack.c.b16 %v715, %v713
        %v738 = vpack.c.b16 %v718, %v716
        %v739 = vpack.c.b16 %v719, %v717
        %v740 = vpack.c.b16 %v722, %v720
        %v741 = vpack.c.b16 %v723, %v721
        %v742 = vpack.c.b16 %v726, %v724
        %v743 = vpack.c.b16 %v727, %v725
        %760 = vmatprep.subr.bf16.mxu0 %v743
        %761 = vmatpush1.bf16.msra.mxu0 %v742
        %762 = vmatprep.subr.bf16.mxu0 %v741
        %763 = vmatpush1.bf16.msra.mxu0 %v740
        %764 = vmatprep.subr.bf16.mxu0 %v739
        %765 = vmatpush1.bf16.msra.mxu0 %v738
        %766 = vmatprep.subr.bf16.mxu0 %v737
        %767 = vmatpush1.bf16.msra.mxu0 %v736
        %768 = vmatprep.subr.bf16.mxu0 %v735
        %769 = vmatpush1.bf16.msra.mxu0 %v734
        %770 = vmatprep.subr.bf16.mxu0 %v733
        %771 = vmatpush1.bf16.msra.mxu0 %v732
        %772 = vmatprep.subr.bf16.mxu0 %v731
        %773 = vmatpush1.bf16.msra.mxu0 %v730
        %774 = vmatprep.subr.bf16.mxu0 %v729
        %775 = vmatpush1.bf16.msra.mxu0 %v728
        %776 = vmatprep.subr.bf16.mxu0 0
        %777 = vmatpush2.bf16.msra.mxu0 0
        %778 = vmatprep.subr.bf16.mxu0 0
        %779 = vmatpush2.bf16.msra.mxu0 0
        %780 = vmatprep.subr.bf16.mxu0 0
        %781 = vmatpush2.bf16.msra.mxu0 0
        %782 = vmatprep.subr.bf16.mxu0 0
        %783 = vmatpush2.bf16.msra.mxu0 0
        %784 = vmatprep.subr.bf16.mxu0 0
        %785 = vmatpush2.bf16.msra.mxu0 0
        %786 = vmatprep.subr.bf16.mxu0 0
        %787 = vmatpush2.bf16.msra.mxu0 0
        %788 = vmatprep.subr.bf16.mxu0 0
        %789 = vmatpush2.bf16.msra.mxu0 0
        %790 = vmatprep.subr.bf16.mxu0 0
        %791 = vmatpush2.bf16.msra.mxu0 0
        %792 = vmatprep.mubr.bf16.mxu0 0
        %793 = vmatmul.mubr.bf16.gmra.mxu0 %v664
        %v794 = vpop.f32.mrf.mxu0
        %v795 = vadd.f32 %v625, %v794
        %v796 = vpop.f32.mrf.mxu0
        %v797 = vadd.f32 %v629, %v796
        %v798 = vpop.f32.mrf.mxu0
        %v799 = vadd.f32 %v625, %v798
        %v800 = vpop.f32.mrf.mxu0
        %v801 = vadd.f32 %v629, %v800
        %802 = vmatprep.mubr.bf16.mxu0 0
        %803 = vmatmul.mubr.bf16.gmra.mxu0 %v665
        %v804 = vpop.f32.mrf.mxu0
        %v805 = vadd.f32 %v625, %v804
        %v806 = vpop.f32.mrf.mxu0
        %v807 = vadd.f32 %v629, %v806
        %v808 = vpop.f32.mrf.mxu0
        %v809 = vadd.f32 %v625, %v808
        %v810 = vpop.f32.mrf.mxu0
        %v811 = vadd.f32 %v629, %v810
        %812 = vmatprep.mubr.bf16.mxu0 0
        %813 = vmatmul.mubr.bf16.gmra.mxu0 %v666
        %v814 = vpop.f32.mrf.mxu0
        %v815 = vadd.f32 %v625, %v814
        %v816 = vpop.f32.mrf.mxu0
        %v817 = vadd.f32 %v629, %v816
        %v818 = vpop.f32.mrf.mxu0
        %v819 = vadd.f32 %v625, %v818
        %v820 = vpop.f32.mrf.mxu0
        %v821 = vadd.f32 %v629, %v820
        %822 = vmatprep.mubr.bf16.mxu0 0
        %823 = vmatmul.mubr.bf16.gmra.mxu0 %v667
        %v824 = vpop.f32.mrf.mxu0
        %v825 = vadd.f32 %v625, %v824
        %v826 = vpop.f32.mrf.mxu0
        %v827 = vadd.f32 %v629, %v826
        %v828 = vpop.f32.mrf.mxu0
        %v829 = vadd.f32 %v625, %v828
        %v830 = vpop.f32.mrf.mxu0
        %v831 = vadd.f32 %v629, %v830
        %832 = vmatprep.mubr.bf16.mxu0 0
        %833 = vmatmul.mubr.bf16.gmra.mxu0 %v668
        %v834 = vpop.f32.mrf.mxu0
        %v835 = vadd.f32 %v625, %v834
        %v836 = vpop.f32.mrf.mxu0
        %v837 = vadd.f32 %v629, %v836
        %v838 = vpop.f32.mrf.mxu0
        %v839 = vadd.f32 %v625, %v838
        %v840 = vpop.f32.mrf.mxu0
        %v841 = vadd.f32 %v629, %v840
        %842 = vmatprep.mubr.bf16.mxu0 0
        %843 = vmatmul.mubr.bf16.gmra.mxu0 %v669
        %v844 = vpop.f32.mrf.mxu0
        %v845 = vadd.f32 %v625, %v844
        %v846 = vpop.f32.mrf.mxu0
        %v847 = vadd.f32 %v629, %v846
        %v848 = vpop.f32.mrf.mxu0
        %v849 = vadd.f32 %v625, %v848
        %v850 = vpop.f32.mrf.mxu0
        %v851 = vadd.f32 %v629, %v850
        %852 = vmatprep.mubr.bf16.mxu0 0
        %853 = vmatmul.mubr.bf16.gmra.mxu0 %v670
        %v854 = vpop.f32.mrf.mxu0
        %v855 = vadd.f32 %v625, %v854
        %v856 = vpop.f32.mrf.mxu0
        %v857 = vadd.f32 %v629, %v856
        %v858 = vpop.f32.mrf.mxu0
        %v859 = vadd.f32 %v625, %v858
        %v860 = vpop.f32.mrf.mxu0
        %v861 = vadd.f32 %v629, %v860
        %862 = vmatprep.mubr.bf16.mxu0 0
        %863 = vmatmul.mubr.bf16.gmra.mxu0 %v671
        %v864 = vpop.f32.mrf.mxu0
        %v865 = vadd.f32 %v625, %v864
        %v866 = vpop.f32.mrf.mxu0
        %v867 = vadd.f32 %v629, %v866
        %v868 = vpop.f32.mrf.mxu0
        %v869 = vadd.f32 %v625, %v868
        %v870 = vpop.f32.mrf.mxu0
        %v871 = vadd.f32 %v629, %v870
        %872 = vdwg.mxu0
        %v873 = vmax.f32 %v795, 0.0
        %v874 = vmax.f32 %v797, 0.0
        %v875 = vmax.f32 %v799, 0.0
        %v876 = vmax.f32 %v801, 0.0
        %v877 = vmax.f32 %v805, 0.0
        %v878 = vmax.f32 %v807, 0.0
        %v879 = vmax.f32 %v809, 0.0
        %v880 = vmax.f32 %v811, 0.0
        %v881 = vmax.f32 %v815, 0.0
        %v882 = vmax.f32 %v817, 0.0
        %v883 = vmax.f32 %v819, 0.0
        %v884 = vmax.f32 %v821, 0.0
        %v885 = vmax.f32 %v825, 0.0
        %v886 = vmax.f32 %v827, 0.0
        %v887 = vmax.f32 %v829, 0.0
        %v888 = vmax.f32 %v831, 0.0
        %v889 = vmax.f32 %v835, 0.0
        %v890 = vmax.f32 %v837, 0.0
        %v891 = vmax.f32 %v839, 0.0
        %v892 = vmax.f32 %v841, 0.0
        %v893 = vmax.f32 %v845, 0.0
        %v894 = vmax.f32 %v847, 0.0
        %v895 = vmax.f32 %v849, 0.0
        %v896 = vmax.f32 %v851, 0.0
        %v897 = vmax.f32 %v855, 0.0
        %v898 = vmax.f32 %v857, 0.0
        %v899 = vmax.f32 %v859, 0.0
        %v900 = vmax.f32 %v861, 0.0
        %v901 = vmax.f32 %v865, 0.0
        %v902 = vmax.f32 %v867, 0.0
        %v903 = vmax.f32 %v869, 0.0
        %v904 = vmax.f32 %v871, 0.0
        %v905 = vpack.c.bf16 %v875, %v873
        %v906 = vpack.c.bf16 %v876, %v874
        %v907 = vpack.c.bf16 %v879, %v877
        %v908 = vpack.c.bf16 %v880, %v878
        %v909 = vpack.c.bf16 %v883, %v881
        %v910 = vpack.c.bf16 %v884, %v882
        %v911 = vpack.c.bf16 %v887, %v885
        %v912 = vpack.c.bf16 %v888, %v886
        %v913 = vpack.c.bf16 %v891, %v889
        %v914 = vpack.c.bf16 %v892, %v890
        %v915 = vpack.c.bf16 %v895, %v893
        %v916 = vpack.c.bf16 %v896, %v894
        %v917 = vpack.c.bf16 %v899, %v897
        %v918 = vpack.c.bf16 %v900, %v898
        %v919 = vpack.c.bf16 %v903, %v901
        %v920 = vpack.c.bf16 %v904, %v902
        %v921 = vld [vmem:[#allocation7] sm:$0xff]
        %v922 = vld [vmem:[#allocation7 + $0x8] sm:$0xff]
        %v923 = vld [vmem:[#allocation7 + $0x10] sm:$0xff]
        %v924 = vld [vmem:[#allocation7 + $0x18] sm:$0xff]
        %v925 = vld [vmem:[#allocation7 + $0x20] sm:$0xff]
        %v926 = vld [vmem:[#allocation7 + $0x28] sm:$0xff]
        %v927 = vld [vmem:[#allocation7 + $0x30] sm:$0xff]
        %v928 = vld [vmem:[#allocation7 + $0x38] sm:$0xff]
        %v929 = vld [vmem:[#allocation7 + $0x40] sm:$0xff]
        %v930 = vld [vmem:[#allocation7 + $0x48] sm:$0xff]
        %v931 = vld [vmem:[#allocation7 + $0x50] sm:$0xff]
        %v932 = vld [vmem:[#allocation7 + $0x58] sm:$0xff]
        %v933 = vld [vmem:[#allocation7 + $0x60] sm:$0xff]
        %v934 = vld [vmem:[#allocation7 + $0x68] sm:$0xff]
        %v935 = vld [vmem:[#allocation7 + $0x70] sm:$0xff]
        %v936 = vld [vmem:[#allocation7 + $0x78] sm:$0xff]
        %v937 = vld [vmem:[#allocation7 + $0x80] sm:$0xff]
        %v938 = vld [vmem:[#allocation7 + $0x88] sm:$0xff]
        %v939 = vld [vmem:[#allocation7 + $0x90] sm:$0xff]
        %v940 = vld [vmem:[#allocation7 + $0x98] sm:$0xff]
        %v941 = vld [vmem:[#allocation7 + $0xa0] sm:$0xff]
        %v942 = vld [vmem:[#allocation7 + $0xa8] sm:$0xff]
        %v943 = vld [vmem:[#allocation7 + $0xb0] sm:$0xff]
        %v944 = vld [vmem:[#allocation7 + $0xb8] sm:$0xff]
        %v945 = vld [vmem:[#allocation7 + $0xc0] sm:$0xff]
        %v946 = vld [vmem:[#allocation7 + $0xc8] sm:$0xff]
        %v947 = vld [vmem:[#allocation7 + $0xd0] sm:$0xff]
        %v948 = vld [vmem:[#allocation7 + $0xd8] sm:$0xff]
        %v949 = vld [vmem:[#allocation7 + $0xe0] sm:$0xff]
        %v950 = vld [vmem:[#allocation7 + $0xe8] sm:$0xff]
        %v951 = vld [vmem:[#allocation7 + $0xf0] sm:$0xff]
        %v952 = vld [vmem:[#allocation7 + $0xf8] sm:$0xff]
        %v953 = vld [vmem:[%s4] sm:$0x3]
        %v955 = vlaneseq
        %v956 = vshrl.u32 %v955, 7
        %v957 = vsub.s32 0, %v956
        %v958 = vrot.slane %v953, %v957
        %v959 = vlaneseq
        %v960 = vshrl.u32 %v959, 7
        %v961 = vsub.s32 1, %v960
        %v962 = vrot.slane %v953, %v961
        %v997 = vunpack.c.l.b16 %v921
        %v998 = vunpack.c.h.b16 %v921
        %v999 = vunpack.c.l.b16 %v922
        %v1000 = vunpack.c.h.b16 %v922
        %v1001 = vunpack.c.l.b16 %v923
        %v1002 = vunpack.c.h.b16 %v923
        %v1003 = vunpack.c.l.b16 %v924
        %v1004 = vunpack.c.h.b16 %v924
        %v1005 = vunpack.c.l.b16 %v925
        %v1006 = vunpack.c.h.b16 %v925
        %v1007 = vunpack.c.l.b16 %v926
        %v1008 = vunpack.c.h.b16 %v926
        %v1009 = vunpack.c.l.b16 %v927
        %v1010 = vunpack.c.h.b16 %v927
        %v1011 = vunpack.c.l.b16 %v928
        %v1012 = vunpack.c.h.b16 %v928
        %v1013 = vunpack.c.l.b16 %v929
        %v1014 = vunpack.c.h.b16 %v929
        %v1015 = vunpack.c.l.b16 %v930
        %v1016 = vunpack.c.h.b16 %v930
        %v1017 = vunpack.c.l.b16 %v931
        %v1018 = vunpack.c.h.b16 %v931
        %v1019 = vunpack.c.l.b16 %v932
        %v1020 = vunpack.c.h.b16 %v932
        %v1021 = vunpack.c.l.b16 %v933
        %v1022 = vunpack.c.h.b16 %v933
        %v1023 = vunpack.c.l.b16 %v934
        %v1024 = vunpack.c.h.b16 %v934
        %v1025 = vunpack.c.l.b16 %v935
        %v1026 = vunpack.c.h.b16 %v935
        %v1027 = vunpack.c.l.b16 %v936
        %v1028 = vunpack.c.h.b16 %v936
        %v1029 = vunpack.c.l.b16 %v937
        %v1030 = vunpack.c.h.b16 %v937
        %v1031 = vunpack.c.l.b16 %v938
        %v1032 = vunpack.c.h.b16 %v938
        %v1033 = vunpack.c.l.b16 %v939
        %v1034 = vunpack.c.h.b16 %v939
        %v1035 = vunpack.c.l.b16 %v940
        %v1036 = vunpack.c.h.b16 %v940
        %v1037 = vunpack.c.l.b16 %v941
        %v1038 = vunpack.c.h.b16 %v941
        %v1039 = vunpack.c.l.b16 %v942
        %v1040 = vunpack.c.h.b16 %v942
        %v1041 = vunpack.c.l.b16 %v943
        %v1042 = vunpack.c.h.b16 %v943
        %v1043 = vunpack.c.l.b16 %v944
        %v1044 = vunpack.c.h.b16 %v944
        %v1045 = vunpack.c.l.b16 %v945
        %v1046 = vunpack.c.h.b16 %v945
        %v1047 = vunpack.c.l.b16 %v946
        %v1048 = vunpack.c.h.b16 %v946
        %v1049 = vunpack.c.l.b16 %v947
        %v1050 = vunpack.c.h.b16 %v947
        %v1051 = vunpack.c.l.b16 %v948
        %v1052 = vunpack.c.h.b16 %v948
        %v1053 = vunpack.c.l.b16 %v949
        %v1054 = vunpack.c.h.b16 %v949
        %v1055 = vunpack.c.l.b16 %v950
        %v1056 = vunpack.c.h.b16 %v950
        %v1057 = vunpack.c.l.b16 %v951
        %v1058 = vunpack.c.h.b16 %v951
        %v1059 = vunpack.c.l.b16 %v952
        %v1060 = vunpack.c.h.b16 %v952
        %v1061 = vpack.c.b16 %v999, %v997
        %v1062 = vpack.c.b16 %v1000, %v998
        %v1063 = vpack.c.b16 %v1003, %v1001
        %v1064 = vpack.c.b16 %v1004, %v1002
        %v1065 = vpack.c.b16 %v1007, %v1005
        %v1066 = vpack.c.b16 %v1008, %v1006
        %v1067 = vpack.c.b16 %v1011, %v1009
        %v1068 = vpack.c.b16 %v1012, %v1010
        %v1069 = vpack.c.b16 %v1015, %v1013
        %v1070 = vpack.c.b16 %v1016, %v1014
        %v1071 = vpack.c.b16 %v1019, %v1017
        %v1072 = vpack.c.b16 %v1020, %v1018
        %v1073 = vpack.c.b16 %v1023, %v1021
        %v1074 = vpack.c.b16 %v1024, %v1022
        %v1075 = vpack.c.b16 %v1027, %v1025
        %v1076 = vpack.c.b16 %v1028, %v1026
        %v1077 = vpack.c.b16 %v1031, %v1029
        %v1078 = vpack.c.b16 %v1032, %v1030
        %v1079 = vpack.c.b16 %v1035, %v1033
        %v1080 = vpack.c.b16 %v1036, %v1034
        %v1081 = vpack.c.b16 %v1039, %v1037
        %v1082 = vpack.c.b16 %v1040, %v1038
        %v1083 = vpack.c.b16 %v1043, %v1041
        %v1084 = vpack.c.b16 %v1044, %v1042
        %v1085 = vpack.c.b16 %v1047, %v1045
        %v1086 = vpack.c.b16 %v1048, %v1046
        %v1087 = vpack.c.b16 %v1051, %v1049
        %v1088 = vpack.c.b16 %v1052, %v1050
        %v1089 = vpack.c.b16 %v1055, %v1053
        %v1090 = vpack.c.b16 %v1056, %v1054
        %v1091 = vpack.c.b16 %v1059, %v1057
        %v1092 = vpack.c.b16 %v1060, %v1058
        %1125 = vmatprep.subr.bf16.mxu0 %v1076
        %1126 = vmatpush1.bf16.msra.mxu0 %v1075
        %1127 = vmatprep.subr.bf16.mxu0 %v1074
        %1128 = vmatpush1.bf16.msra.mxu0 %v1073
        %1129 = vmatprep.subr.bf16.mxu0 %v1072
        %1130 = vmatpush1.bf16.msra.mxu0 %v1071
        %1131 = vmatprep.subr.bf16.mxu0 %v1070
        %1132 = vmatpush1.bf16.msra.mxu0 %v1069
        %1133 = vmatprep.subr.bf16.mxu0 %v1068
        %1134 = vmatpush1.bf16.msra.mxu0 %v1067
        %1135 = vmatprep.subr.bf16.mxu0 %v1066
        %1136 = vmatpush1.bf16.msra.mxu0 %v1065
        %1137 = vmatprep.subr.bf16.mxu0 %v1064
        %1138 = vmatpush1.bf16.msra.mxu0 %v1063
        %1139 = vmatprep.subr.bf16.mxu0 %v1062
        %1140 = vmatpush1.bf16.msra.mxu0 %v1061
        %1141 = vmatprep.subr.bf16.mxu0 %v1092
        %1142 = vmatpush2.bf16.msra.mxu0 %v1091
        %1143 = vmatprep.subr.bf16.mxu0 %v1090
        %1144 = vmatpush2.bf16.msra.mxu0 %v1089
        %1145 = vmatprep.subr.bf16.mxu0 %v1088
        %1146 = vmatpush2.bf16.msra.mxu0 %v1087
        %1147 = vmatprep.subr.bf16.mxu0 %v1086
        %1148 = vmatpush2.bf16.msra.mxu0 %v1085
        %1149 = vmatprep.subr.bf16.mxu0 %v1084
        %1150 = vmatpush2.bf16.msra.mxu0 %v1083
        %1151 = vmatprep.subr.bf16.mxu0 %v1082
        %1152 = vmatpush2.bf16.msra.mxu0 %v1081
        %1153 = vmatprep.subr.bf16.mxu0 %v1080
        %1154 = vmatpush2.bf16.msra.mxu0 %v1079
        %1155 = vmatprep.subr.bf16.mxu0 %v1078
        %1156 = vmatpush2.bf16.msra.mxu0 %v1077
        %1157 = vmatprep.mubr.bf16.mxu0 %v906
        %1158 = vmatmul.mubr.bf16.gmra.mxu0 %v905
        %v1159 = vpop.f32.mrf.mxu0
        %v1160 = vadd.f32 %v958, %v1159
        %v1161 = vpop.f32.mrf.mxu0
        %v1162 = vadd.f32 %v962, %v1161
        %v1163 = vpop.f32.mrf.mxu0
        %v1164 = vadd.f32 %v958, %v1163
        %v1165 = vpop.f32.mrf.mxu0
        %v1166 = vadd.f32 %v962, %v1165
        %1167 = vmatprep.mubr.bf16.mxu0 %v908
        %1168 = vmatmul.mubr.bf16.gmra.mxu0 %v907
        %v1169 = vpop.f32.mrf.mxu0
        %v1170 = vadd.f32 %v958, %v1169
        %v1171 = vpop.f32.mrf.mxu0
        %v1172 = vadd.f32 %v962, %v1171
        %v1173 = vpop.f32.mrf.mxu0
        %v1174 = vadd.f32 %v958, %v1173
        %v1175 = vpop.f32.mrf.mxu0
        %v1176 = vadd.f32 %v962, %v1175
        %1177 = vmatprep.mubr.bf16.mxu0 %v910
        %1178 = vmatmul.mubr.bf16.gmra.mxu0 %v909
        %v1179 = vpop.f32.mrf.mxu0
        %v1180 = vadd.f32 %v958, %v1179
        %v1181 = vpop.f32.mrf.mxu0
        %v1182 = vadd.f32 %v962, %v1181
        %v1183 = vpop.f32.mrf.mxu0
        %v1184 = vadd.f32 %v958, %v1183
        %v1185 = vpop.f32.mrf.mxu0
        %v1186 = vadd.f32 %v962, %v1185
        %1187 = vmatprep.mubr.bf16.mxu0 %v912
        %1188 = vmatmul.mubr.bf16.gmra.mxu0 %v911
        %v1189 = vpop.f32.mrf.mxu0
        %v1190 = vadd.f32 %v958, %v1189
        %v1191 = vpop.f32.mrf.mxu0
        %v1192 = vadd.f32 %v962, %v1191
        %v1193 = vpop.f32.mrf.mxu0
        %v1194 = vadd.f32 %v958, %v1193
        %v1195 = vpop.f32.mrf.mxu0
        %v1196 = vadd.f32 %v962, %v1195
        %1197 = vmatprep.mubr.bf16.mxu0 %v914
        %1198 = vmatmul.mubr.bf16.gmra.mxu0 %v913
        %v1199 = vpop.f32.mrf.mxu0
        %v1200 = vadd.f32 %v958, %v1199
        %v1201 = vpop.f32.mrf.mxu0
        %v1202 = vadd.f32 %v962, %v1201
        %v1203 = vpop.f32.mrf.mxu0
        %v1204 = vadd.f32 %v958, %v1203
        %v1205 = vpop.f32.mrf.mxu0
        %v1206 = vadd.f32 %v962, %v1205
        %1207 = vmatprep.mubr.bf16.mxu0 %v916
        %1208 = vmatmul.mubr.bf16.gmra.mxu0 %v915
        %v1209 = vpop.f32.mrf.mxu0
        %v1210 = vadd.f32 %v958, %v1209
        %v1211 = vpop.f32.mrf.mxu0
        %v1212 = vadd.f32 %v962, %v1211
        %v1213 = vpop.f32.mrf.mxu0
        %v1214 = vadd.f32 %v958, %v1213
        %v1215 = vpop.f32.mrf.mxu0
        %v1216 = vadd.f32 %v962, %v1215
        %1217 = vmatprep.mubr.bf16.mxu0 %v918
        %1218 = vmatmul.mubr.bf16.gmra.mxu0 %v917
        %v1219 = vpop.f32.mrf.mxu0
        %v1220 = vadd.f32 %v958, %v1219
        %v1221 = vpop.f32.mrf.mxu0
        %v1222 = vadd.f32 %v962, %v1221
        %v1223 = vpop.f32.mrf.mxu0
        %v1224 = vadd.f32 %v958, %v1223
        %v1225 = vpop.f32.mrf.mxu0
        %v1226 = vadd.f32 %v962, %v1225
        %1227 = vmatprep.mubr.bf16.mxu0 %v920
        %1228 = vmatmul.mubr.bf16.gmra.mxu0 %v919
        %v1229 = vpop.f32.mrf.mxu0
        %v1230 = vadd.f32 %v958, %v1229
        %v1231 = vpop.f32.mrf.mxu0
        %v1232 = vadd.f32 %v962, %v1231
        %v1233 = vpop.f32.mrf.mxu0
        %v1234 = vadd.f32 %v958, %v1233
        %v1235 = vpop.f32.mrf.mxu0
        %v1236 = vadd.f32 %v962, %v1235
        %1237 = vdwg.mxu0
        %v1238 = vmax.f32 %v1160, 0.0
        %v1239 = vmax.f32 %v1162, 0.0
        %v1240 = vmax.f32 %v1164, 0.0
        %v1241 = vmax.f32 %v1166, 0.0
        %v1242 = vmax.f32 %v1170, 0.0
        %v1243 = vmax.f32 %v1172, 0.0
        %v1244 = vmax.f32 %v1174, 0.0
        %v1245 = vmax.f32 %v1176, 0.0
        %v1246 = vmax.f32 %v1180, 0.0
        %v1247 = vmax.f32 %v1182, 0.0
        %v1248 = vmax.f32 %v1184, 0.0
        %v1249 = vmax.f32 %v1186, 0.0
        %v1250 = vmax.f32 %v1190, 0.0
        %v1251 = vmax.f32 %v1192, 0.0
        %v1252 = vmax.f32 %v1194, 0.0
        %v1253 = vmax.f32 %v1196, 0.0
        %v1254 = vmax.f32 %v1200, 0.0
        %v1255 = vmax.f32 %v1202, 0.0
        %v1256 = vmax.f32 %v1204, 0.0
        %v1257 = vmax.f32 %v1206, 0.0
        %v1258 = vmax.f32 %v1210, 0.0
        %v1259 = vmax.f32 %v1212, 0.0
        %v1260 = vmax.f32 %v1214, 0.0
        %v1261 = vmax.f32 %v1216, 0.0
        %v1262 = vmax.f32 %v1220, 0.0
        %v1263 = vmax.f32 %v1222, 0.0
        %v1264 = vmax.f32 %v1224, 0.0
        %v1265 = vmax.f32 %v1226, 0.0
        %v1266 = vmax.f32 %v1230, 0.0
        %v1267 = vmax.f32 %v1232, 0.0
        %v1268 = vmax.f32 %v1234, 0.0
        %v1269 = vmax.f32 %v1236, 0.0
        %v1270 = vpack.c.bf16 %v1240, %v1238
        %v1271 = vpack.c.bf16 %v1241, %v1239
        %v1272 = vpack.c.bf16 %v1244, %v1242
        %v1273 = vpack.c.bf16 %v1245, %v1243
        %v1274 = vpack.c.bf16 %v1248, %v1246
        %v1275 = vpack.c.bf16 %v1249, %v1247
        %v1276 = vpack.c.bf16 %v1252, %v1250
        %v1277 = vpack.c.bf16 %v1253, %v1251
        %v1278 = vpack.c.bf16 %v1256, %v1254
        %v1279 = vpack.c.bf16 %v1257, %v1255
        %v1280 = vpack.c.bf16 %v1260, %v1258
        %v1281 = vpack.c.bf16 %v1261, %v1259
        %v1282 = vpack.c.bf16 %v1264, %v1262
        %v1283 = vpack.c.bf16 %v1265, %v1263
        %v1284 = vpack.c.bf16 %v1268, %v1266
        %v1285 = vpack.c.bf16 %v1269, %v1267
        %v1286 = vld [vmem:[#allocation8] sm:$0xf]
        %v1287 = vld [vmem:[#allocation8 + $0x4] sm:$0xf]
        %v1288 = vld [vmem:[#allocation8 + $0x8] sm:$0xf]
        %v1289 = vld [vmem:[#allocation8 + $0xc] sm:$0xf]
        %v1290 = vld [vmem:[#allocation8 + $0x10] sm:$0xf]
        %v1291 = vld [vmem:[#allocation8 + $0x14] sm:$0xf]
        %v1292 = vld [vmem:[#allocation8 + $0x18] sm:$0xf]
        %v1293 = vld [vmem:[#allocation8 + $0x1c] sm:$0xf]
        %v1294 = vld [vmem:[#allocation8 + $0x20] sm:$0xf]
        %v1295 = vld [vmem:[#allocation8 + $0x24] sm:$0xf]
        %v1296 = vld [vmem:[#allocation8 + $0x28] sm:$0xf]
        %v1297 = vld [vmem:[#allocation8 + $0x2c] sm:$0xf]
        %v1298 = vld [vmem:[#allocation8 + $0x30] sm:$0xf]
        %v1299 = vld [vmem:[#allocation8 + $0x34] sm:$0xf]
        %v1300 = vld [vmem:[#allocation8 + $0x38] sm:$0xf]
        %v1301 = vld [vmem:[#allocation8 + $0x3c] sm:$0xf]
        %v1302 = vld [vmem:[#allocation8 + $0x40] sm:$0xf]
        %v1303 = vld [vmem:[#allocation8 + $0x44] sm:$0xf]
        %v1304 = vld [vmem:[#allocation8 + $0x48] sm:$0xf]
        %v1305 = vld [vmem:[#allocation8 + $0x4c] sm:$0xf]
        %v1306 = vld [vmem:[#allocation8 + $0x50] sm:$0xf]
        %v1307 = vld [vmem:[#allocation8 + $0x54] sm:$0xf]
        %v1308 = vld [vmem:[#allocation8 + $0x58] sm:$0xf]
        %v1309 = vld [vmem:[#allocation8 + $0x5c] sm:$0xf]
        %v1310 = vld [vmem:[#allocation8 + $0x60] sm:$0xf]
        %v1311 = vld [vmem:[#allocation8 + $0x64] sm:$0xf]
        %v1312 = vld [vmem:[#allocation8 + $0x68] sm:$0xf]
        %v1313 = vld [vmem:[#allocation8 + $0x6c] sm:$0xf]
        %v1314 = vld [vmem:[#allocation8 + $0x70] sm:$0xf]
        %v1315 = vld [vmem:[#allocation8 + $0x74] sm:$0xf]
        %v1316 = vld [vmem:[#allocation8 + $0x78] sm:$0xf]
        %v1317 = vld [vmem:[#allocation8 + $0x7c] sm:$0xf]
        %v1318 = vld [vmem:[%s6] sm:$0x1]
        %v1320 = vlaneseq
        %v1321 = vshrl.u32 %v1320, 7
        %v1322 = vsub.s32 0, %v1321
        %v1323 = vrot.slane %v1318, %v1322
        %v1357 = vunpack.c.l.b16 %v1286
        %v1358 = vunpack.c.l.b16 %v1287
        %v1359 = vunpack.c.l.b16 %v1288
        %v1360 = vunpack.c.l.b16 %v1289
        %v1361 = vunpack.c.l.b16 %v1290
        %v1362 = vunpack.c.l.b16 %v1291
        %v1363 = vunpack.c.l.b16 %v1292
        %v1364 = vunpack.c.l.b16 %v1293
        %v1365 = vunpack.c.l.b16 %v1294
        %v1366 = vunpack.c.l.b16 %v1295
        %v1367 = vunpack.c.l.b16 %v1296
        %v1368 = vunpack.c.l.b16 %v1297
        %v1369 = vunpack.c.l.b16 %v1298
        %v1370 = vunpack.c.l.b16 %v1299
        %v1371 = vunpack.c.l.b16 %v1300
        %v1372 = vunpack.c.l.b16 %v1301
        %v1373 = vunpack.c.l.b16 %v1302
        %v1374 = vunpack.c.l.b16 %v1303
        %v1375 = vunpack.c.l.b16 %v1304
        %v1376 = vunpack.c.l.b16 %v1305
        %v1377 = vunpack.c.l.b16 %v1306
        %v1378 = vunpack.c.l.b16 %v1307
        %v1379 = vunpack.c.l.b16 %v1308
        %v1380 = vunpack.c.l.b16 %v1309
        %v1381 = vunpack.c.l.b16 %v1310
        %v1382 = vunpack.c.l.b16 %v1311
        %v1383 = vunpack.c.l.b16 %v1312
        %v1384 = vunpack.c.l.b16 %v1313
        %v1385 = vunpack.c.l.b16 %v1314
        %v1386 = vunpack.c.l.b16 %v1315
        %v1387 = vunpack.c.l.b16 %v1316
        %v1388 = vunpack.c.l.b16 %v1317
        %v1389 = vpack.c.b16 %v1358, %v1357
        %v1390 = vpack.c.b16 %v1360, %v1359
        %v1391 = vpack.c.b16 %v1362, %v1361
        %v1392 = vpack.c.b16 %v1364, %v1363
        %v1393 = vpack.c.b16 %v1366, %v1365
        %v1394 = vpack.c.b16 %v1368, %v1367
        %v1395 = vpack.c.b16 %v1370, %v1369
        %v1396 = vpack.c.b16 %v1372, %v1371
        %v1397 = vpack.c.b16 %v1374, %v1373
        %v1398 = vpack.c.b16 %v1376, %v1375
        %v1399 = vpack.c.b16 %v1378, %v1377
        %v1400 = vpack.c.b16 %v1380, %v1379
        %v1401 = vpack.c.b16 %v1382, %v1381
        %v1402 = vpack.c.b16 %v1384, %v1383
        %v1403 = vpack.c.b16 %v1386, %v1385
        %v1404 = vpack.c.b16 %v1388, %v1387
        %1421 = vmatprep.subr.bf16.mxu0 0
        %1422 = vmatpush1.bf16.msra.mxu0 %v1396
        %1423 = vmatprep.subr.bf16.mxu0 0
        %1424 = vmatpush1.bf16.msra.mxu0 %v1395
        %1425 = vmatprep.subr.bf16.mxu0 0
        %1426 = vmatpush1.bf16.msra.mxu0 %v1394
        %1427 = vmatprep.subr.bf16.mxu0 0
        %1428 = vmatpush1.bf16.msra.mxu0 %v1393
        %1429 = vmatprep.subr.bf16.mxu0 0
        %1430 = vmatpush1.bf16.msra.mxu0 %v1392
        %1431 = vmatprep.subr.bf16.mxu0 0
        %1432 = vmatpush1.bf16.msra.mxu0 %v1391
        %1433 = vmatprep.subr.bf16.mxu0 0
        %1434 = vmatpush1.bf16.msra.mxu0 %v1390
        %1435 = vmatprep.subr.bf16.mxu0 0
        %1436 = vmatpush1.bf16.msra.mxu0 %v1389
        %1437 = vmatprep.subr.bf16.mxu0 0
        %1438 = vmatpush2.bf16.msra.mxu0 %v1404
        %1439 = vmatprep.subr.bf16.mxu0 0
        %1440 = vmatpush2.bf16.msra.mxu0 %v1403
        %1441 = vmatprep.subr.bf16.mxu0 0
        %1442 = vmatpush2.bf16.msra.mxu0 %v1402
        %1443 = vmatprep.subr.bf16.mxu0 0
        %1444 = vmatpush2.bf16.msra.mxu0 %v1401
        %1445 = vmatprep.subr.bf16.mxu0 0
        %1446 = vmatpush2.bf16.msra.mxu0 %v1400
        %1447 = vmatprep.subr.bf16.mxu0 0
        %1448 = vmatpush2.bf16.msra.mxu0 %v1399
        %1449 = vmatprep.subr.bf16.mxu0 0
        %1450 = vmatpush2.bf16.msra.mxu0 %v1398
        %1451 = vmatprep.subr.bf16.mxu0 0
        %1452 = vmatpush2.bf16.msra.mxu0 %v1397
        %1453 = vmatprep.mubr.bf16.mxu0 %v1271
        %1454 = vmatmul.mubr.bf16.gmra.mxu0 %v1270
        %v1455 = vpop.f32.mrf.mxu0
        %v1456 = vadd.f32 %v1323, %v1455
        %v1457 = vpop.f32.mrf.mxu0
        %v1458 = vpop.f32.mrf.mxu0
        %v1459 = vadd.f32 %v1323, %v1458
        %v1460 = vpop.f32.mrf.mxu0
        %1461 = vmatprep.mubr.bf16.mxu0 %v1273
        %1462 = vmatmul.mubr.bf16.gmra.mxu0 %v1272
        %v1463 = vpop.f32.mrf.mxu0
        %v1464 = vadd.f32 %v1323, %v1463
        %v1465 = vpop.f32.mrf.mxu0
        %v1466 = vpop.f32.mrf.mxu0
        %v1467 = vadd.f32 %v1323, %v1466
        %v1468 = vpop.f32.mrf.mxu0
        %1469 = vmatprep.mubr.bf16.mxu0 %v1275
        %1470 = vmatmul.mubr.bf16.gmra.mxu0 %v1274
        %v1471 = vpop.f32.mrf.mxu0
        %v1472 = vadd.f32 %v1323, %v1471
        %v1473 = vpop.f32.mrf.mxu0
        %v1474 = vpop.f32.mrf.mxu0
        %v1475 = vadd.f32 %v1323, %v1474
        %v1476 = vpop.f32.mrf.mxu0
        %1477 = vmatprep.mubr.bf16.mxu0 %v1277
        %1478 = vmatmul.mubr.bf16.gmra.mxu0 %v1276
        %v1479 = vpop.f32.mrf.mxu0
        %v1480 = vadd.f32 %v1323, %v1479
        %v1481 = vpop.f32.mrf.mxu0
        %v1482 = vpop.f32.mrf.mxu0
        %v1483 = vadd.f32 %v1323, %v1482
        %v1484 = vpop.f32.mrf.mxu0
        %1485 = vmatprep.mubr.bf16.mxu0 %v1279
        %1486 = vmatmul.mubr.bf16.gmra.mxu0 %v1278
        %v1487 = vpop.f32.mrf.mxu0
        %v1488 = vadd.f32 %v1323, %v1487
        %v1489 = vpop.f32.mrf.mxu0
        %v1490 = vpop.f32.mrf.mxu0
        %v1491 = vadd.f32 %v1323, %v1490
        %v1492 = vpop.f32.mrf.mxu0
        %1493 = vmatprep.mubr.bf16.mxu0 %v1281
        %1494 = vmatmul.mubr.bf16.gmra.mxu0 %v1280
        %v1495 = vpop.f32.mrf.mxu0
        %v1496 = vadd.f32 %v1323, %v1495
        %v1497 = vpop.f32.mrf.mxu0
        %v1498 = vpop.f32.mrf.mxu0
        %v1499 = vadd.f32 %v1323, %v1498
        %v1500 = vpop.f32.mrf.mxu0
        %1501 = vmatprep.mubr.bf16.mxu0 %v1283
        %1502 = vmatmul.mubr.bf16.gmra.mxu0 %v1282
        %v1503 = vpop.f32.mrf.mxu0
        %v1504 = vadd.f32 %v1323, %v1503
        %v1505 = vpop.f32.mrf.mxu0
        %v1506 = vpop.f32.mrf.mxu0
        %v1507 = vadd.f32 %v1323, %v1506
        %v1508 = vpop.f32.mrf.mxu0
        %1509 = vmatprep.mubr.bf16.mxu0 %v1285
        %1510 = vmatmul.mubr.bf16.gmra.mxu0 %v1284
        %v1511 = vpop.f32.mrf.mxu0
        %v1512 = vadd.f32 %v1323, %v1511
        %v1513 = vpop.f32.mrf.mxu0
        %v1514 = vpop.f32.mrf.mxu0
        %v1515 = vadd.f32 %v1323, %v1514
        %v1516 = vpop.f32.mrf.mxu0
        %1517 = vdwg.mxu0
        %v1518 = vtanh.pop %v1456
        %v1519 = vtanh.pop %v1459
        %v1520 = vtanh.pop %v1464
        %v1521 = vtanh.pop %v1467
        %v1522 = vtanh.pop %v1472
        %v1523 = vtanh.pop %v1475
        %v1524 = vtanh.pop %v1480
        %v1525 = vtanh.pop %v1483
        %v1526 = vtanh.pop %v1488
        %v1527 = vtanh.pop %v1491
        %v1528 = vtanh.pop %v1496
        %v1529 = vtanh.pop %v1499
        %v1530 = vtanh.pop %v1504
        %v1531 = vtanh.pop %v1507
        %v1532 = vtanh.pop %v1512
        %v1533 = vtanh.pop %v1515
        %1534 = vst [vmem:[%s576] sm:$0xff] %v1518
        %1535 = vst [vmem:[%s576 + $0x8] sm:$0xff] %v1519
        %1536 = vst [vmem:[%s576 + $0x10] sm:$0xff] %v1520
        %1537 = vst [vmem:[%s576 + $0x18] sm:$0xff] %v1521
        %1538 = vst [vmem:[%s576 + $0x20] sm:$0xff] %v1522
        %1539 = vst [vmem:[%s576 + $0x28] sm:$0xff] %v1523
        %1540 = vst [vmem:[%s576 + $0x30] sm:$0xff] %v1524
        %1541 = vst [vmem:[%s576 + $0x38] sm:$0xff] %v1525
        %1542 = vst [vmem:[%s576 + $0x40] sm:$0xff] %v1526
        %1543 = vst [vmem:[%s576 + $0x48] sm:$0xff] %v1527
        %1544 = vst [vmem:[%s576 + $0x50] sm:$0xff] %v1528
        %1545 = vst [vmem:[%s576 + $0x58] sm:$0xff] %v1529
        %1546 = vst [vmem:[%s576 + $0x60] sm:$0xff] %v1530
        %1547 = vst [vmem:[%s576 + $0x68] sm:$0xff] %v1531
        %1548 = vst [vmem:[%s576 + $0x70] sm:$0xff] %v1532
        %1549 = vst [vmem:[%s576 + $0x78] sm:$0xff] %v1533
        %v1550 = vld [vmem:[#allocation10] sm:$0xff]
        %v1551 = vld [vmem:[#allocation10 + $0x8] sm:$0xff]
        %v1552 = vld [vmem:[#allocation10 + $0x10] sm:$0xff]
        %v1553 = vld [vmem:[#allocation10 + $0x18] sm:$0xff]
        %v1554 = vld [vmem:[#allocation10 + $0x20] sm:$0xff]
        %v1555 = vld [vmem:[#allocation10 + $0x28] sm:$0xff]
        %v1556 = vld [vmem:[#allocation10 + $0x30] sm:$0xff]
        %v1557 = vld [vmem:[#allocation10 + $0x38] sm:$0xff]
        %v1558 = vld [vmem:[#allocation10 + $0x40] sm:$0xff]
        %v1559 = vld [vmem:[#allocation10 + $0x48] sm:$0xff]
        %v1560 = vld [vmem:[#allocation10 + $0x50] sm:$0xff]
        %v1561 = vld [vmem:[#allocation10 + $0x58] sm:$0xff]
        %v1562 = vld [vmem:[#allocation10 + $0x60] sm:$0xff]
        %v1563 = vld [vmem:[#allocation10 + $0x68] sm:$0xff]
        %v1564 = vld [vmem:[#allocation10 + $0x70] sm:$0xff]
        %v1565 = vld [vmem:[#allocation10 + $0x78] sm:$0xff]
        %v1566 = vld [vmem:[%s8] sm:$0x3]
        %v1568 = vlaneseq
        %v1569 = vshrl.u32 %v1568, 7
        %v1570 = vsub.s32 0, %v1569
        %v1571 = vrot.slane %v1566, %v1570
        %v1572 = vlaneseq
        %v1573 = vshrl.u32 %v1572, 7
        %v1574 = vsub.s32 1, %v1573
        %v1575 = vrot.slane %v1566, %v1574
        %v1594 = vunpack.c.l.b16 %v1550
        %v1595 = vunpack.c.h.b16 %v1550
        %v1596 = vunpack.c.l.b16 %v1551
        %v1597 = vunpack.c.h.b16 %v1551
        %v1598 = vunpack.c.l.b16 %v1552
        %v1599 = vunpack.c.h.b16 %v1552
        %v1600 = vunpack.c.l.b16 %v1553
        %v1601 = vunpack.c.h.b16 %v1553
        %v1602 = vunpack.c.l.b16 %v1554
        %v1603 = vunpack.c.h.b16 %v1554
        %v1604 = vunpack.c.l.b16 %v1555
        %v1605 = vunpack.c.h.b16 %v1555
        %v1606 = vunpack.c.l.b16 %v1556
        %v1607 = vunpack.c.h.b16 %v1556
        %v1608 = vunpack.c.l.b16 %v1557
        %v1609 = vunpack.c.h.b16 %v1557
        %v1610 = vunpack.c.l.b16 %v1558
        %v1611 = vunpack.c.h.b16 %v1558
        %v1612 = vunpack.c.l.b16 %v1559
        %v1613 = vunpack.c.h.b16 %v1559
        %v1614 = vunpack.c.l.b16 %v1560
        %v1615 = vunpack.c.h.b16 %v1560
        %v1616 = vunpack.c.l.b16 %v1561
        %v1617 = vunpack.c.h.b16 %v1561
        %v1618 = vunpack.c.l.b16 %v1562
        %v1619 = vunpack.c.h.b16 %v1562
        %v1620 = vunpack.c.l.b16 %v1563
        %v1621 = vunpack.c.h.b16 %v1563
        %v1622 = vunpack.c.l.b16 %v1564
        %v1623 = vunpack.c.h.b16 %v1564
        %v1624 = vunpack.c.l.b16 %v1565
        %v1625 = vunpack.c.h.b16 %v1565
        %v1626 = vpack.c.b16 %v1596, %v1594
        %v1627 = vpack.c.b16 %v1597, %v1595
        %v1628 = vpack.c.b16 %v1600, %v1598
        %v1629 = vpack.c.b16 %v1601, %v1599
        %v1630 = vpack.c.b16 %v1604, %v1602
        %v1631 = vpack.c.b16 %v1605, %v1603
        %v1632 = vpack.c.b16 %v1608, %v1606
        %v1633 = vpack.c.b16 %v1609, %v1607
        %v1634 = vpack.c.b16 %v1612, %v1610
        %v1635 = vpack.c.b16 %v1613, %v1611
        %v1636 = vpack.c.b16 %v1616, %v1614
        %v1637 = vpack.c.b16 %v1617, %v1615
        %v1638 = vpack.c.b16 %v1620, %v1618
        %v1639 = vpack.c.b16 %v1621, %v1619
        %v1640 = vpack.c.b16 %v1624, %v1622
        %v1641 = vpack.c.b16 %v1625, %v1623
        %1658 = vmatprep.subr.bf16.mxu0 %v1641
        %1659 = vmatpush1.bf16.msra.mxu0 %v1640
        %1660 = vmatprep.subr.bf16.mxu0 %v1639
        %1661 = vmatpush1.bf16.msra.mxu0 %v1638
        %1662 = vmatprep.subr.bf16.mxu0 %v1637
        %1663 = vmatpush1.bf16.msra.mxu0 %v1636
        %1664 = vmatprep.subr.bf16.mxu0 %v1635
        %1665 = vmatpush1.bf16.msra.mxu0 %v1634
        %1666 = vmatprep.subr.bf16.mxu0 %v1633
        %1667 = vmatpush1.bf16.msra.mxu0 %v1632
        %1668 = vmatprep.subr.bf16.mxu0 %v1631
        %1669 = vmatpush1.bf16.msra.mxu0 %v1630
        %1670 = vmatprep.subr.bf16.mxu0 %v1629
        %1671 = vmatpush1.bf16.msra.mxu0 %v1628
        %1672 = vmatprep.subr.bf16.mxu0 %v1627
        %1673 = vmatpush1.bf16.msra.mxu0 %v1626
        %1674 = vmatprep.subr.bf16.mxu0 0
        %1675 = vmatpush2.bf16.msra.mxu0 0
        %1676 = vmatprep.subr.bf16.mxu0 0
        %1677 = vmatpush2.bf16.msra.mxu0 0
        %1678 = vmatprep.subr.bf16.mxu0 0
        %1679 = vmatpush2.bf16.msra.mxu0 0
        %1680 = vmatprep.subr.bf16.mxu0 0
        %1681 = vmatpush2.bf16.msra.mxu0 0
        %1682 = vmatprep.subr.bf16.mxu0 0
        %1683 = vmatpush2.bf16.msra.mxu0 0
        %1684 = vmatprep.subr.bf16.mxu0 0
        %1685 = vmatpush2.bf16.msra.mxu0 0
        %1686 = vmatprep.subr.bf16.mxu0 0
        %1687 = vmatpush2.bf16.msra.mxu0 0
        %1688 = vmatprep.subr.bf16.mxu0 0
        %1689 = vmatpush2.bf16.msra.mxu0 0
        %1690 = vmatprep.mubr.bf16.mxu0 0
        %1691 = vmatmul.mubr.bf16.gmra.mxu0 %v664
        %v1692 = vpop.f32.mrf.mxu0
        %v1693 = vadd.f32 %v1571, %v1692
        %v1694 = vpop.f32.mrf.mxu0
        %v1695 = vadd.f32 %v1575, %v1694
        %v1696 = vpop.f32.mrf.mxu0
        %v1697 = vadd.f32 %v1571, %v1696
        %v1698 = vpop.f32.mrf.mxu0
        %v1699 = vadd.f32 %v1575, %v1698
        %1700 = vmatprep.mubr.bf16.mxu0 0
        %1701 = vmatmul.mubr.bf16.gmra.mxu0 %v665
        %v1702 = vpop.f32.mrf.mxu0
        %v1703 = vadd.f32 %v1571, %v1702
        %v1704 = vpop.f32.mrf.mxu0
        %v1705 = vadd.f32 %v1575, %v1704
        %v1706 = vpop.f32.mrf.mxu0
        %v1707 = vadd.f32 %v1571, %v1706
        %v1708 = vpop.f32.mrf.mxu0
        %v1709 = vadd.f32 %v1575, %v1708
        %1710 = vmatprep.mubr.bf16.mxu0 0
        %1711 = vmatmul.mubr.bf16.gmra.mxu0 %v666
        %v1712 = vpop.f32.mrf.mxu0
        %v1713 = vadd.f32 %v1571, %v1712
        %v1714 = vpop.f32.mrf.mxu0
        %v1715 = vadd.f32 %v1575, %v1714
        %v1716 = vpop.f32.mrf.mxu0
        %v1717 = vadd.f32 %v1571, %v1716
        %v1718 = vpop.f32.mrf.mxu0
        %v1719 = vadd.f32 %v1575, %v1718
        %1720 = vmatprep.mubr.bf16.mxu0 0
        %1721 = vmatmul.mubr.bf16.gmra.mxu0 %v667
        %v1722 = vpop.f32.mrf.mxu0
        %v1723 = vadd.f32 %v1571, %v1722
        %v1724 = vpop.f32.mrf.mxu0
        %v1725 = vadd.f32 %v1575, %v1724
        %v1726 = vpop.f32.mrf.mxu0
        %v1727 = vadd.f32 %v1571, %v1726
        %v1728 = vpop.f32.mrf.mxu0
        %v1729 = vadd.f32 %v1575, %v1728
        %1730 = vmatprep.mubr.bf16.mxu0 0
        %1731 = vmatmul.mubr.bf16.gmra.mxu0 %v668
        %v1732 = vpop.f32.mrf.mxu0
        %v1733 = vadd.f32 %v1571, %v1732
        %v1734 = vpop.f32.mrf.mxu0
        %v1735 = vadd.f32 %v1575, %v1734
        %v1736 = vpop.f32.mrf.mxu0
        %v1737 = vadd.f32 %v1571, %v1736
        %v1738 = vpop.f32.mrf.mxu0
        %v1739 = vadd.f32 %v1575, %v1738
        %1740 = vmatprep.mubr.bf16.mxu0 0
        %1741 = vmatmul.mubr.bf16.gmra.mxu0 %v669
        %v1742 = vpop.f32.mrf.mxu0
        %v1743 = vadd.f32 %v1571, %v1742
        %v1744 = vpop.f32.mrf.mxu0
        %v1745 = vadd.f32 %v1575, %v1744
        %v1746 = vpop.f32.mrf.mxu0
        %v1747 = vadd.f32 %v1571, %v1746
        %v1748 = vpop.f32.mrf.mxu0
        %v1749 = vadd.f32 %v1575, %v1748
        %1750 = vmatprep.mubr.bf16.mxu0 0
        %1751 = vmatmul.mubr.bf16.gmra.mxu0 %v670
        %v1752 = vpop.f32.mrf.mxu0
        %v1753 = vadd.f32 %v1571, %v1752
        %v1754 = vpop.f32.mrf.mxu0
        %v1755 = vadd.f32 %v1575, %v1754
        %v1756 = vpop.f32.mrf.mxu0
        %v1757 = vadd.f32 %v1571, %v1756
        %v1758 = vpop.f32.mrf.mxu0
        %v1759 = vadd.f32 %v1575, %v1758
        %1760 = vmatprep.mubr.bf16.mxu0 0
        %1761 = vmatmul.mubr.bf16.gmra.mxu0 %v671
        %v1762 = vpop.f32.mrf.mxu0
        %v1763 = vadd.f32 %v1571, %v1762
        %v1764 = vpop.f32.mrf.mxu0
        %v1765 = vadd.f32 %v1575, %v1764
        %v1766 = vpop.f32.mrf.mxu0
        %v1767 = vadd.f32 %v1571, %v1766
        %v1768 = vpop.f32.mrf.mxu0
        %v1769 = vadd.f32 %v1575, %v1768
        %1770 = vdwg.mxu0
        %v1771 = vmax.f32 %v1693, 0.0
        %v1772 = vmax.f32 %v1695, 0.0
        %v1773 = vmax.f32 %v1697, 0.0
        %v1774 = vmax.f32 %v1699, 0.0
        %v1775 = vmax.f32 %v1703, 0.0
        %v1776 = vmax.f32 %v1705, 0.0
        %v1777 = vmax.f32 %v1707, 0.0
        %v1778 = vmax.f32 %v1709, 0.0
        %v1779 = vmax.f32 %v1713, 0.0
        %v1780 = vmax.f32 %v1715, 0.0
        %v1781 = vmax.f32 %v1717, 0.0
        %v1782 = vmax.f32 %v1719, 0.0
        %v1783 = vmax.f32 %v1723, 0.0
        %v1784 = vmax.f32 %v1725, 0.0
        %v1785 = vmax.f32 %v1727, 0.0
        %v1786 = vmax.f32 %v1729, 0.0
        %v1787 = vmax.f32 %v1733, 0.0
        %v1788 = vmax.f32 %v1735, 0.0
        %v1789 = vmax.f32 %v1737, 0.0
        %v1790 = vmax.f32 %v1739, 0.0
        %v1791 = vmax.f32 %v1743, 0.0
        %v1792 = vmax.f32 %v1745, 0.0
        %v1793 = vmax.f32 %v1747, 0.0
        %v1794 = vmax.f32 %v1749, 0.0
        %v1795 = vmax.f32 %v1753, 0.0
        %v1796 = vmax.f32 %v1755, 0.0
        %v1797 = vmax.f32 %v1757, 0.0
        %v1798 = vmax.f32 %v1759, 0.0
        %v1799 = vmax.f32 %v1763, 0.0
        %v1800 = vmax.f32 %v1765, 0.0
        %v1801 = vmax.f32 %v1767, 0.0
        %v1802 = vmax.f32 %v1769, 0.0
        %v1803 = vpack.c.bf16 %v1773, %v1771
        %v1804 = vpack.c.bf16 %v1774, %v1772
        %v1805 = vpack.c.bf16 %v1777, %v1775
        %v1806 = vpack.c.bf16 %v1778, %v1776
        %v1807 = vpack.c.bf16 %v1781, %v1779
        %v1808 = vpack.c.bf16 %v1782, %v1780
        %v1809 = vpack.c.bf16 %v1785, %v1783
        %v1810 = vpack.c.bf16 %v1786, %v1784
        %v1811 = vpack.c.bf16 %v1789, %v1787
        %v1812 = vpack.c.bf16 %v1790, %v1788
        %v1813 = vpack.c.bf16 %v1793, %v1791
        %v1814 = vpack.c.bf16 %v1794, %v1792
        %v1815 = vpack.c.bf16 %v1797, %v1795
        %v1816 = vpack.c.bf16 %v1798, %v1796
        %v1817 = vpack.c.bf16 %v1801, %v1799
        %v1818 = vpack.c.bf16 %v1802, %v1800
        %v1819 = vld [vmem:[#allocation11] sm:$0xff]
        %v1820 = vld [vmem:[#allocation11 + $0x8] sm:$0xff]
        %v1821 = vld [vmem:[#allocation11 + $0x10] sm:$0xff]
        %v1822 = vld [vmem:[#allocation11 + $0x18] sm:$0xff]
        %v1823 = vld [vmem:[#allocation11 + $0x20] sm:$0xff]
        %v1824 = vld [vmem:[#allocation11 + $0x28] sm:$0xff]
        %v1825 = vld [vmem:[#allocation11 + $0x30] sm:$0xff]
        %v1826 = vld [vmem:[#allocation11 + $0x38] sm:$0xff]
        %v1827 = vld [vmem:[#allocation11 + $0x40] sm:$0xff]
        %v1828 = vld [vmem:[#allocation11 + $0x48] sm:$0xff]
        %v1829 = vld [vmem:[#allocation11 + $0x50] sm:$0xff]
        %v1830 = vld [vmem:[#allocation11 + $0x58] sm:$0xff]
        %v1831 = vld [vmem:[#allocation11 + $0x60] sm:$0xff]
        %v1832 = vld [vmem:[#allocation11 + $0x68] sm:$0xff]
        %v1833 = vld [vmem:[#allocation11 + $0x70] sm:$0xff]
        %v1834 = vld [vmem:[#allocation11 + $0x78] sm:$0xff]
        %v1835 = vld [vmem:[#allocation11 + $0x80] sm:$0xff]
        %v1836 = vld [vmem:[#allocation11 + $0x88] sm:$0xff]
        %v1837 = vld [vmem:[#allocation11 + $0x90] sm:$0xff]
        %v1838 = vld [vmem:[#allocation11 + $0x98] sm:$0xff]
        %v1839 = vld [vmem:[#allocation11 + $0xa0] sm:$0xff]
        %v1840 = vld [vmem:[#allocation11 + $0xa8] sm:$0xff]
        %v1841 = vld [vmem:[#allocation11 + $0xb0] sm:$0xff]
        %v1842 = vld [vmem:[#allocation11 + $0xb8] sm:$0xff]
        %v1843 = vld [vmem:[#allocation11 + $0xc0] sm:$0xff]
        %v1844 = vld [vmem:[#allocation11 + $0xc8] sm:$0xff]
        %v1845 = vld [vmem:[#allocation11 + $0xd0] sm:$0xff]
        %v1846 = vld [vmem:[#allocation11 + $0xd8] sm:$0xff]
        %v1847 = vld [vmem:[#allocation11 + $0xe0] sm:$0xff]
        %v1848 = vld [vmem:[#allocation11 + $0xe8] sm:$0xff]
        %v1849 = vld [vmem:[#allocation11 + $0xf0] sm:$0xff]
        %v1850 = vld [vmem:[#allocation11 + $0xf8] sm:$0xff]
        %v1851 = vld [vmem:[%s10] sm:$0x3]
        %v1853 = vlaneseq
        %v1854 = vshrl.u32 %v1853, 7
        %v1855 = vsub.s32 0, %v1854
        %v1856 = vrot.slane %v1851, %v1855
        %v1857 = vlaneseq
        %v1858 = vshrl.u32 %v1857, 7
        %v1859 = vsub.s32 1, %v1858
        %v1860 = vrot.slane %v1851, %v1859
        %v1895 = vunpack.c.l.b16 %v1819
        %v1896 = vunpack.c.h.b16 %v1819
        %v1897 = vunpack.c.l.b16 %v1820
        %v1898 = vunpack.c.h.b16 %v1820
        %v1899 = vunpack.c.l.b16 %v1821
        %v1900 = vunpack.c.h.b16 %v1821
        %v1901 = vunpack.c.l.b16 %v1822
        %v1902 = vunpack.c.h.b16 %v1822
        %v1903 = vunpack.c.l.b16 %v1823
        %v1904 = vunpack.c.h.b16 %v1823
        %v1905 = vunpack.c.l.b16 %v1824
        %v1906 = vunpack.c.h.b16 %v1824
        %v1907 = vunpack.c.l.b16 %v1825
        %v1908 = vunpack.c.h.b16 %v1825
        %v1909 = vunpack.c.l.b16 %v1826
        %v1910 = vunpack.c.h.b16 %v1826
        %v1911 = vunpack.c.l.b16 %v1827
        %v1912 = vunpack.c.h.b16 %v1827
        %v1913 = vunpack.c.l.b16 %v1828
        %v1914 = vunpack.c.h.b16 %v1828
        %v1915 = vunpack.c.l.b16 %v1829
        %v1916 = vunpack.c.h.b16 %v1829
        %v1917 = vunpack.c.l.b16 %v1830
        %v1918 = vunpack.c.h.b16 %v1830
        %v1919 = vunpack.c.l.b16 %v1831
        %v1920 = vunpack.c.h.b16 %v1831
        %v1921 = vunpack.c.l.b16 %v1832
        %v1922 = vunpack.c.h.b16 %v1832
        %v1923 = vunpack.c.l.b16 %v1833
        %v1924 = vunpack.c.h.b16 %v1833
        %v1925 = vunpack.c.l.b16 %v1834
        %v1926 = vunpack.c.h.b16 %v1834
        %v1927 = vunpack.c.l.b16 %v1835
        %v1928 = vunpack.c.h.b16 %v1835
        %v1929 = vunpack.c.l.b16 %v1836
        %v1930 = vunpack.c.h.b16 %v1836
        %v1931 = vunpack.c.l.b16 %v1837
        %v1932 = vunpack.c.h.b16 %v1837
        %v1933 = vunpack.c.l.b16 %v1838
        %v1934 = vunpack.c.h.b16 %v1838
        %v1935 = vunpack.c.l.b16 %v1839
        %v1936 = vunpack.c.h.b16 %v1839
        %v1937 = vunpack.c.l.b16 %v1840
        %v1938 = vunpack.c.h.b16 %v1840
        %v1939 = vunpack.c.l.b16 %v1841
        %v1940 = vunpack.c.h.b16 %v1841
        %v1941 = vunpack.c.l.b16 %v1842
        %v1942 = vunpack.c.h.b16 %v1842
        %v1943 = vunpack.c.l.b16 %v1843
        %v1944 = vunpack.c.h.b16 %v1843
        %v1945 = vunpack.c.l.b16 %v1844
        %v1946 = vunpack.c.h.b16 %v1844
        %v1947 = vunpack.c.l.b16 %v1845
        %v1948 = vunpack.c.h.b16 %v1845
        %v1949 = vunpack.c.l.b16 %v1846
        %v1950 = vunpack.c.h.b16 %v1846
        %v1951 = vunpack.c.l.b16 %v1847
        %v1952 = vunpack.c.h.b16 %v1847
        %v1953 = vunpack.c.l.b16 %v1848
        %v1954 = vunpack.c.h.b16 %v1848
        %v1955 = vunpack.c.l.b16 %v1849
        %v1956 = vunpack.c.h.b16 %v1849
        %v1957 = vunpack.c.l.b16 %v1850
        %v1958 = vunpack.c.h.b16 %v1850
        %v1959 = vpack.c.b16 %v1897, %v1895
        %v1960 = vpack.c.b16 %v1898, %v1896
        %v1961 = vpack.c.b16 %v1901, %v1899
        %v1962 = vpack.c.b16 %v1902, %v1900
        %v1963 = vpack.c.b16 %v1905, %v1903
        %v1964 = vpack.c.b16 %v1906, %v1904
        %v1965 = vpack.c.b16 %v1909, %v1907
        %v1966 = vpack.c.b16 %v1910, %v1908
        %v1967 = vpack.c.b16 %v1913, %v1911
        %v1968 = vpack.c.b16 %v1914, %v1912
        %v1969 = vpack.c.b16 %v1917, %v1915
        %v1970 = vpack.c.b16 %v1918, %v1916
        %v1971 = vpack.c.b16 %v1921, %v1919
        %v1972 = vpack.c.b16 %v1922, %v1920
        %v1973 = vpack.c.b16 %v1925, %v1923
        %v1974 = vpack.c.b16 %v1926, %v1924
        %v1975 = vpack.c.b16 %v1929, %v1927
        %v1976 = vpack.c.b16 %v1930, %v1928
        %v1977 = vpack.c.b16 %v1933, %v1931
        %v1978 = vpack.c.b16 %v1934, %v1932
        %v1979 = vpack.c.b16 %v1937, %v1935
        %v1980 = vpack.c.b16 %v1938, %v1936
        %v1981 = vpack.c.b16 %v1941, %v1939
        %v1982 = vpack.c.b16 %v1942, %v1940
        %v1983 = vpack.c.b16 %v1945, %v1943
        %v1984 = vpack.c.b16 %v1946, %v1944
        %v1985 = vpack.c.b16 %v1949, %v1947
        %v1986 = vpack.c.b16 %v1950, %v1948
        %v1987 = vpack.c.b16 %v1953, %v1951
        %v1988 = vpack.c.b16 %v1954, %v1952
        %v1989 = vpack.c.b16 %v1957, %v1955
        %v1990 = vpack.c.b16 %v1958, %v1956
        %2023 = vmatprep.subr.bf16.mxu0 %v1974
        %2024 = vmatpush1.bf16.msra.mxu0 %v1973
        %2025 = vmatprep.subr.bf16.mxu0 %v1972
        %2026 = vmatpush1.bf16.msra.mxu0 %v1971
        %2027 = vmatprep.subr.bf16.mxu0 %v1970
        %2028 = vmatpush1.bf16.msra.mxu0 %v1969
        %2029 = vmatprep.subr.bf16.mxu0 %v1968
        %2030 = vmatpush1.bf16.msra.mxu0 %v1967
        %2031 = vmatprep.subr.bf16.mxu0 %v1966
        %2032 = vmatpush1.bf16.msra.mxu0 %v1965
        %2033 = vmatprep.subr.bf16.mxu0 %v1964
        %2034 = vmatpush1.bf16.msra.mxu0 %v1963
        %2035 = vmatprep.subr.bf16.mxu0 %v1962
        %2036 = vmatpush1.bf16.msra.mxu0 %v1961
        %2037 = vmatprep.subr.bf16.mxu0 %v1960
        %2038 = vmatpush1.bf16.msra.mxu0 %v1959
        %2039 = vmatprep.subr.bf16.mxu0 %v1990
        %2040 = vmatpush2.bf16.msra.mxu0 %v1989
        %2041 = vmatprep.subr.bf16.mxu0 %v1988
        %2042 = vmatpush2.bf16.msra.mxu0 %v1987
        %2043 = vmatprep.subr.bf16.mxu0 %v1986
        %2044 = vmatpush2.bf16.msra.mxu0 %v1985
        %2045 = vmatprep.subr.bf16.mxu0 %v1984
        %2046 = vmatpush2.bf16.msra.mxu0 %v1983
        %2047 = vmatprep.subr.bf16.mxu0 %v1982
        %2048 = vmatpush2.bf16.msra.mxu0 %v1981
        %2049 = vmatprep.subr.bf16.mxu0 %v1980
        %2050 = vmatpush2.bf16.msra.mxu0 %v1979
        %2051 = vmatprep.subr.bf16.mxu0 %v1978
        %2052 = vmatpush2.bf16.msra.mxu0 %v1977
        %2053 = vmatprep.subr.bf16.mxu0 %v1976
        %2054 = vmatpush2.bf16.msra.mxu0 %v1975
        %2055 = vmatprep.mubr.bf16.mxu0 %v1804
        %2056 = vmatmul.mubr.bf16.gmra.mxu0 %v1803
        %v2057 = vpop.f32.mrf.mxu0
        %v2058 = vadd.f32 %v1856, %v2057
        %v2059 = vpop.f32.mrf.mxu0
        %v2060 = vadd.f32 %v1860, %v2059
        %v2061 = vpop.f32.mrf.mxu0
        %v2062 = vadd.f32 %v1856, %v2061
        %v2063 = vpop.f32.mrf.mxu0
        %v2064 = vadd.f32 %v1860, %v2063
        %2065 = vmatprep.mubr.bf16.mxu0 %v1806
        %2066 = vmatmul.mubr.bf16.gmra.mxu0 %v1805
        %v2067 = vpop.f32.mrf.mxu0
        %v2068 = vadd.f32 %v1856, %v2067
        %v2069 = vpop.f32.mrf.mxu0
        %v2070 = vadd.f32 %v1860, %v2069
        %v2071 = vpop.f32.mrf.mxu0
        %v2072 = vadd.f32 %v1856, %v2071
        %v2073 = vpop.f32.mrf.mxu0
        %v2074 = vadd.f32 %v1860, %v2073
        %2075 = vmatprep.mubr.bf16.mxu0 %v1808
        %2076 = vmatmul.mubr.bf16.gmra.mxu0 %v1807
        %v2077 = vpop.f32.mrf.mxu0
        %v2078 = vadd.f32 %v1856, %v2077
        %v2079 = vpop.f32.mrf.mxu0
        %v2080 = vadd.f32 %v1860, %v2079
        %v2081 = vpop.f32.mrf.mxu0
        %v2082 = vadd.f32 %v1856, %v2081
        %v2083 = vpop.f32.mrf.mxu0
        %v2084 = vadd.f32 %v1860, %v2083
        %2085 = vmatprep.mubr.bf16.mxu0 %v1810
        %2086 = vmatmul.mubr.bf16.gmra.mxu0 %v1809
        %v2087 = vpop.f32.mrf.mxu0
        %v2088 = vadd.f32 %v1856, %v2087
        %v2089 = vpop.f32.mrf.mxu0
        %v2090 = vadd.f32 %v1860, %v2089
        %v2091 = vpop.f32.mrf.mxu0
        %v2092 = vadd.f32 %v1856, %v2091
        %v2093 = vpop.f32.mrf.mxu0
        %v2094 = vadd.f32 %v1860, %v2093
        %2095 = vmatprep.mubr.bf16.mxu0 %v1812
        %2096 = vmatmul.mubr.bf16.gmra.mxu0 %v1811
        %v2097 = vpop.f32.mrf.mxu0
        %v2098 = vadd.f32 %v1856, %v2097
        %v2099 = vpop.f32.mrf.mxu0
        %v2100 = vadd.f32 %v1860, %v2099
        %v2101 = vpop.f32.mrf.mxu0
        %v2102 = vadd.f32 %v1856, %v2101
        %v2103 = vpop.f32.mrf.mxu0
        %v2104 = vadd.f32 %v1860, %v2103
        %2105 = vmatprep.mubr.bf16.mxu0 %v1814
        %2106 = vmatmul.mubr.bf16.gmra.mxu0 %v1813
        %v2107 = vpop.f32.mrf.mxu0
        %v2108 = vadd.f32 %v1856, %v2107
        %v2109 = vpop.f32.mrf.mxu0
        %v2110 = vadd.f32 %v1860, %v2109
        %v2111 = vpop.f32.mrf.mxu0
        %v2112 = vadd.f32 %v1856, %v2111
        %v2113 = vpop.f32.mrf.mxu0
        %v2114 = vadd.f32 %v1860, %v2113
        %2115 = vmatprep.mubr.bf16.mxu0 %v1816
        %2116 = vmatmul.mubr.bf16.gmra.mxu0 %v1815
        %v2117 = vpop.f32.mrf.mxu0
        %v2118 = vadd.f32 %v1856, %v2117
        %v2119 = vpop.f32.mrf.mxu0
        %v2120 = vadd.f32 %v1860, %v2119
        %v2121 = vpop.f32.mrf.mxu0
        %v2122 = vadd.f32 %v1856, %v2121
        %v2123 = vpop.f32.mrf.mxu0
        %v2124 = vadd.f32 %v1860, %v2123
        %2125 = vmatprep.mubr.bf16.mxu0 %v1818
        %2126 = vmatmul.mubr.bf16.gmra.mxu0 %v1817
        %v2127 = vpop.f32.mrf.mxu0
        %v2128 = vadd.f32 %v1856, %v2127
        %v2129 = vpop.f32.mrf.mxu0
        %v2130 = vadd.f32 %v1860, %v2129
        %v2131 = vpop.f32.mrf.mxu0
        %v2132 = vadd.f32 %v1856, %v2131
        %v2133 = vpop.f32.mrf.mxu0
        %v2134 = vadd.f32 %v1860, %v2133
        %2135 = vdwg.mxu0
        %v2136 = vmax.f32 %v2058, 0.0
        %v2137 = vmax.f32 %v2060, 0.0
        %v2138 = vmax.f32 %v2062, 0.0
        %v2139 = vmax.f32 %v2064, 0.0
        %v2140 = vmax.f32 %v2068, 0.0
        %v2141 = vmax.f32 %v2070, 0.0
        %v2142 = vmax.f32 %v2072, 0.0
        %v2143 = vmax.f32 %v2074, 0.0
        %v2144 = vmax.f32 %v2078, 0.0
        %v2145 = vmax.f32 %v2080, 0.0
        %v2146 = vmax.f32 %v2082, 0.0
        %v2147 = vmax.f32 %v2084, 0.0
        %v2148 = vmax.f32 %v2088, 0.0
        %v2149 = vmax.f32 %v2090, 0.0
        %v2150 = vmax.f32 %v2092, 0.0
        %v2151 = vmax.f32 %v2094, 0.0
        %v2152 = vmax.f32 %v2098, 0.0
        %v2153 = vmax.f32 %v2100, 0.0
        %v2154 = vmax.f32 %v2102, 0.0
        %v2155 = vmax.f32 %v2104, 0.0
        %v2156 = vmax.f32 %v2108, 0.0
        %v2157 = vmax.f32 %v2110, 0.0
        %v2158 = vmax.f32 %v2112, 0.0
        %v2159 = vmax.f32 %v2114, 0.0
        %v2160 = vmax.f32 %v2118, 0.0
        %v2161 = vmax.f32 %v2120, 0.0
        %v2162 = vmax.f32 %v2122, 0.0
        %v2163 = vmax.f32 %v2124, 0.0
        %v2164 = vmax.f32 %v2128, 0.0
        %v2165 = vmax.f32 %v2130, 0.0
        %v2166 = vmax.f32 %v2132, 0.0
        %v2167 = vmax.f32 %v2134, 0.0
        %v2168 = vpack.c.bf16 %v2138, %v2136
        %v2169 = vpack.c.bf16 %v2139, %v2137
        %v2170 = vpack.c.bf16 %v2142, %v2140
        %v2171 = vpack.c.bf16 %v2143, %v2141
        %v2172 = vpack.c.bf16 %v2146, %v2144
        %v2173 = vpack.c.bf16 %v2147, %v2145
        %v2174 = vpack.c.bf16 %v2150, %v2148
        %v2175 = vpack.c.bf16 %v2151, %v2149
        %v2176 = vpack.c.bf16 %v2154, %v2152
        %v2177 = vpack.c.bf16 %v2155, %v2153
        %v2178 = vpack.c.bf16 %v2158, %v2156
        %v2179 = vpack.c.bf16 %v2159, %v2157
        %v2180 = vpack.c.bf16 %v2162, %v2160
        %v2181 = vpack.c.bf16 %v2163, %v2161
        %v2182 = vpack.c.bf16 %v2166, %v2164
        %v2183 = vpack.c.bf16 %v2167, %v2165
        %v2184 = vld [vmem:[#allocation13] sm:$0xf]
        %v2185 = vld [vmem:[#allocation13 + $0x4] sm:$0xf]
        %v2186 = vld [vmem:[#allocation13 + $0x8] sm:$0xf]
        %v2187 = vld [vmem:[#allocation13 + $0xc] sm:$0xf]
        %v2188 = vld [vmem:[#allocation13 + $0x10] sm:$0xf]
        %v2189 = vld [vmem:[#allocation13 + $0x14] sm:$0xf]
        %v2190 = vld [vmem:[#allocation13 + $0x18] sm:$0xf]
        %v2191 = vld [vmem:[#allocation13 + $0x1c] sm:$0xf]
        %v2192 = vld [vmem:[#allocation13 + $0x20] sm:$0xf]
        %v2193 = vld [vmem:[#allocation13 + $0x24] sm:$0xf]
        %v2194 = vld [vmem:[#allocation13 + $0x28] sm:$0xf]
        %v2195 = vld [vmem:[#allocation13 + $0x2c] sm:$0xf]
        %v2196 = vld [vmem:[#allocation13 + $0x30] sm:$0xf]
        %v2197 = vld [vmem:[#allocation13 + $0x34] sm:$0xf]
        %v2198 = vld [vmem:[#allocation13 + $0x38] sm:$0xf]
        %v2199 = vld [vmem:[#allocation13 + $0x3c] sm:$0xf]
        %v2200 = vld [vmem:[#allocation13 + $0x40] sm:$0xf]
        %v2201 = vld [vmem:[#allocation13 + $0x44] sm:$0xf]
        %v2202 = vld [vmem:[#allocation13 + $0x48] sm:$0xf]
        %v2203 = vld [vmem:[#allocation13 + $0x4c] sm:$0xf]
        %v2204 = vld [vmem:[#allocation13 + $0x50] sm:$0xf]
        %v2205 = vld [vmem:[#allocation13 + $0x54] sm:$0xf]
        %v2206 = vld [vmem:[#allocation13 + $0x58] sm:$0xf]
        %v2207 = vld [vmem:[#allocation13 + $0x5c] sm:$0xf]
        %v2208 = vld [vmem:[#allocation13 + $0x60] sm:$0xf]
        %v2209 = vld [vmem:[#allocation13 + $0x64] sm:$0xf]
        %v2210 = vld [vmem:[#allocation13 + $0x68] sm:$0xf]
        %v2211 = vld [vmem:[#allocation13 + $0x6c] sm:$0xf]
        %v2212 = vld [vmem:[#allocation13 + $0x70] sm:$0xf]
        %v2213 = vld [vmem:[#allocation13 + $0x74] sm:$0xf]
        %v2214 = vld [vmem:[#allocation13 + $0x78] sm:$0xf]
        %v2215 = vld [vmem:[#allocation13 + $0x7c] sm:$0xf]
        %v2216 = vld [vmem:[%s12] sm:$0x1]
        %v2218 = vlaneseq
        %v2219 = vshrl.u32 %v2218, 7
        %v2220 = vsub.s32 0, %v2219
        %v2221 = vrot.slane %v2216, %v2220
        %v2255 = vunpack.c.l.b16 %v2184
        %v2256 = vunpack.c.l.b16 %v2185
        %v2257 = vunpack.c.l.b16 %v2186
        %v2258 = vunpack.c.l.b16 %v2187
        %v2259 = vunpack.c.l.b16 %v2188
        %v2260 = vunpack.c.l.b16 %v2189
        %v2261 = vunpack.c.l.b16 %v2190
        %v2262 = vunpack.c.l.b16 %v2191
        %v2263 = vunpack.c.l.b16 %v2192
        %v2264 = vunpack.c.l.b16 %v2193
        %v2265 = vunpack.c.l.b16 %v2194
        %v2266 = vunpack.c.l.b16 %v2195
        %v2267 = vunpack.c.l.b16 %v2196
        %v2268 = vunpack.c.l.b16 %v2197
        %v2269 = vunpack.c.l.b16 %v2198
        %v2270 = vunpack.c.l.b16 %v2199
        %v2271 = vunpack.c.l.b16 %v2200
        %v2272 = vunpack.c.l.b16 %v2201
        %v2273 = vunpack.c.l.b16 %v2202
        %v2274 = vunpack.c.l.b16 %v2203
        %v2275 = vunpack.c.l.b16 %v2204
        %v2276 = vunpack.c.l.b16 %v2205
        %v2277 = vunpack.c.l.b16 %v2206
        %v2278 = vunpack.c.l.b16 %v2207
        %v2279 = vunpack.c.l.b16 %v2208
        %v2280 = vunpack.c.l.b16 %v2209
        %v2281 = vunpack.c.l.b16 %v2210
        %v2282 = vunpack.c.l.b16 %v2211
        %v2283 = vunpack.c.l.b16 %v2212
        %v2284 = vunpack.c.l.b16 %v2213
        %v2285 = vunpack.c.l.b16 %v2214
        %v2286 = vunpack.c.l.b16 %v2215
        %v2287 = vpack.c.b16 %v2256, %v2255
        %v2288 = vpack.c.b16 %v2258, %v2257
        %v2289 = vpack.c.b16 %v2260, %v2259
        %v2290 = vpack.c.b16 %v2262, %v2261
        %v2291 = vpack.c.b16 %v2264, %v2263
        %v2292 = vpack.c.b16 %v2266, %v2265
        %v2293 = vpack.c.b16 %v2268, %v2267
        %v2294 = vpack.c.b16 %v2270, %v2269
        %v2295 = vpack.c.b16 %v2272, %v2271
        %v2296 = vpack.c.b16 %v2274, %v2273
        %v2297 = vpack.c.b16 %v2276, %v2275
        %v2298 = vpack.c.b16 %v2278, %v2277
        %v2299 = vpack.c.b16 %v2280, %v2279
        %v2300 = vpack.c.b16 %v2282, %v2281
        %v2301 = vpack.c.b16 %v2284, %v2283
        %v2302 = vpack.c.b16 %v2286, %v2285
        %2319 = vmatprep.subr.bf16.mxu0 0
        %2320 = vmatpush1.bf16.msra.mxu0 %v2294
        %2321 = vmatprep.subr.bf16.mxu0 0
        %2322 = vmatpush1.bf16.msra.mxu0 %v2293
        %2323 = vmatprep.subr.bf16.mxu0 0
        %2324 = vmatpush1.bf16.msra.mxu0 %v2292
        %2325 = vmatprep.subr.bf16.mxu0 0
        %2326 = vmatpush1.bf16.msra.mxu0 %v2291
        %2327 = vmatprep.subr.bf16.mxu0 0
        %2328 = vmatpush1.bf16.msra.mxu0 %v2290
        %2329 = vmatprep.subr.bf16.mxu0 0
        %2330 = vmatpush1.bf16.msra.mxu0 %v2289
        %2331 = vmatprep.subr.bf16.mxu0 0
        %2332 = vmatpush1.bf16.msra.mxu0 %v2288
        %2333 = vmatprep.subr.bf16.mxu0 0
        %2334 = vmatpush1.bf16.msra.mxu0 %v2287
        %2335 = vmatprep.subr.bf16.mxu0 0
        %2336 = vmatpush2.bf16.msra.mxu0 %v2302
        %2337 = vmatprep.subr.bf16.mxu0 0
        %2338 = vmatpush2.bf16.msra.mxu0 %v2301
        %2339 = vmatprep.subr.bf16.mxu0 0
        %2340 = vmatpush2.bf16.msra.mxu0 %v2300
        %2341 = vmatprep.subr.bf16.mxu0 0
        %2342 = vmatpush2.bf16.msra.mxu0 %v2299
        %2343 = vmatprep.subr.bf16.mxu0 0
        %2344 = vmatpush2.bf16.msra.mxu0 %v2298
        %2345 = vmatprep.subr.bf16.mxu0 0
        %2346 = vmatpush2.bf16.msra.mxu0 %v2297
        %2347 = vmatprep.subr.bf16.mxu0 0
        %2348 = vmatpush2.bf16.msra.mxu0 %v2296
        %2349 = vmatprep.subr.bf16.mxu0 0
        %2350 = vmatpush2.bf16.msra.mxu0 %v2295
        %2351 = vmatprep.mubr.bf16.mxu0 %v2169
        %2352 = vmatmul.mubr.bf16.gmra.mxu0 %v2168
        %v2353 = vpop.f32.mrf.mxu0
        %v2354 = vadd.f32 %v2221, %v2353
        %v2355 = vpop.f32.mrf.mxu0
        %v2356 = vpop.f32.mrf.mxu0
        %v2357 = vadd.f32 %v2221, %v2356
        %v2358 = vpop.f32.mrf.mxu0
        %2359 = vmatprep.mubr.bf16.mxu0 %v2171
        %2360 = vmatmul.mubr.bf16.gmra.mxu0 %v2170
        %v2361 = vpop.f32.mrf.mxu0
        %v2362 = vadd.f32 %v2221, %v2361
        %v2363 = vpop.f32.mrf.mxu0
        %v2364 = vpop.f32.mrf.mxu0
        %v2365 = vadd.f32 %v2221, %v2364
        %v2366 = vpop.f32.mrf.mxu0
        %2367 = vmatprep.mubr.bf16.mxu0 %v2173
        %2368 = vmatmul.mubr.bf16.gmra.mxu0 %v2172
        %v2369 = vpop.f32.mrf.mxu0
        %v2370 = vadd.f32 %v2221, %v2369
        %v2371 = vpop.f32.mrf.mxu0
        %v2372 = vpop.f32.mrf.mxu0
        %v2373 = vadd.f32 %v2221, %v2372
        %v2374 = vpop.f32.mrf.mxu0
        %2375 = vmatprep.mubr.bf16.mxu0 %v2175
        %2376 = vmatmul.mubr.bf16.gmra.mxu0 %v2174
        %v2377 = vpop.f32.mrf.mxu0
        %v2378 = vadd.f32 %v2221, %v2377
        %v2379 = vpop.f32.mrf.mxu0
        %v2380 = vpop.f32.mrf.mxu0
        %v2381 = vadd.f32 %v2221, %v2380
        %v2382 = vpop.f32.mrf.mxu0
        %2383 = vmatprep.mubr.bf16.mxu0 %v2177
        %2384 = vmatmul.mubr.bf16.gmra.mxu0 %v2176
        %v2385 = vpop.f32.mrf.mxu0
        %v2386 = vadd.f32 %v2221, %v2385
        %v2387 = vpop.f32.mrf.mxu0
        %v2388 = vpop.f32.mrf.mxu0
        %v2389 = vadd.f32 %v2221, %v2388
        %v2390 = vpop.f32.mrf.mxu0
        %2391 = vmatprep.mubr.bf16.mxu0 %v2179
        %2392 = vmatmul.mubr.bf16.gmra.mxu0 %v2178
        %v2393 = vpop.f32.mrf.mxu0
        %v2394 = vadd.f32 %v2221, %v2393
        %v2395 = vpop.f32.mrf.mxu0
        %v2396 = vpop.f32.mrf.mxu0
        %v2397 = vadd.f32 %v2221, %v2396
        %v2398 = vpop.f32.mrf.mxu0
        %2399 = vmatprep.mubr.bf16.mxu0 %v2181
        %2400 = vmatmul.mubr.bf16.gmra.mxu0 %v2180
        %v2401 = vpop.f32.mrf.mxu0
        %v2402 = vadd.f32 %v2221, %v2401
        %v2403 = vpop.f32.mrf.mxu0
        %v2404 = vpop.f32.mrf.mxu0
        %v2405 = vadd.f32 %v2221, %v2404
        %v2406 = vpop.f32.mrf.mxu0
        %2407 = vmatprep.mubr.bf16.mxu0 %v2183
        %2408 = vmatmul.mubr.bf16.gmra.mxu0 %v2182
        %v2409 = vpop.f32.mrf.mxu0
        %v2410 = vadd.f32 %v2221, %v2409
        %v2411 = vpop.f32.mrf.mxu0
        %v2412 = vpop.f32.mrf.mxu0
        %v2413 = vadd.f32 %v2221, %v2412
        %v2414 = vpop.f32.mrf.mxu0
        %2415 = vdwg.mxu0
        %v2416 = vtanh.pop %v2354
        %v2417 = vtanh.pop %v2357
        %v2418 = vtanh.pop %v2362
        %v2419 = vtanh.pop %v2365
        %v2420 = vtanh.pop %v2370
        %v2421 = vtanh.pop %v2373
        %v2422 = vtanh.pop %v2378
        %v2423 = vtanh.pop %v2381
        %v2424 = vtanh.pop %v2386
        %v2425 = vtanh.pop %v2389
        %v2426 = vtanh.pop %v2394
        %v2427 = vtanh.pop %v2397
        %v2428 = vtanh.pop %v2402
        %v2429 = vtanh.pop %v2405
        %v2430 = vtanh.pop %v2410
        %v2431 = vtanh.pop %v2413
        %2432 = vst [vmem:[%s583] sm:$0xff] %v2416
        %2433 = vst [vmem:[%s583 + $0x8] sm:$0xff] %v2417
        %2434 = vst [vmem:[%s583 + $0x10] sm:$0xff] %v2418
        %2435 = vst [vmem:[%s583 + $0x18] sm:$0xff] %v2419
        %2436 = vst [vmem:[%s583 + $0x20] sm:$0xff] %v2420
        %2437 = vst [vmem:[%s583 + $0x28] sm:$0xff] %v2421
        %2438 = vst [vmem:[%s583 + $0x30] sm:$0xff] %v2422
        %2439 = vst [vmem:[%s583 + $0x38] sm:$0xff] %v2423
        %2440 = vst [vmem:[%s583 + $0x40] sm:$0xff] %v2424
        %2441 = vst [vmem:[%s583 + $0x48] sm:$0xff] %v2425
        %2442 = vst [vmem:[%s583 + $0x50] sm:$0xff] %v2426
        %2443 = vst [vmem:[%s583 + $0x58] sm:$0xff] %v2427
        %2444 = vst [vmem:[%s583 + $0x60] sm:$0xff] %v2428
        %2445 = vst [vmem:[%s583 + $0x68] sm:$0xff] %v2429
        %2446 = vst [vmem:[%s583 + $0x70] sm:$0xff] %v2430
        %2447 = vst [vmem:[%s583 + $0x78] sm:$0xff] %v2431
        %s2448 = sand.u32 %s324, 1
        %s2449 = scalar_lea.sflag [#allocation4], %s2448
        %s2450 = sand.u32 %s324, 1
        %s2451 = smul.addr %s2450, 128
        %s2452 = scalar_lea.vmem [#allocation14], %s2451
        %s2453 = sand.u32 %s350, 1
        %s2454 = scalar_lea.sflag [#allocation16], %s2453
        %s2455 = sand.u32 %s350, 1
        %s2456 = smul.addr %s2455, 128
        %s2457 = scalar_lea.vmem [#allocation15], %s2456
        // Predicated region
        $region101: #{tpu_custom_call.1} parent=71 // pred_check
          %p2458 = pneg %p334
        $region102: #{tpu_custom_call.1} parent=71 // pred_check_branch
          %2460 = sbr.rel (%p2458) target = $region104
        $region103: #{tpu_custom_call.1} parent=71 // pred_region
          %s2461 = smul.u32 16, %s38
          %s2463 = ssub.s32 2048, 2048
          %2464 = vsyncadd %s2449, %s2463
          %s2465 = smul.addr %s2461, 128
          %s2466 = scalar_lea.hbm %s13, %s2465
          %s2467 = sshll.u32 %s2452, 4
          %s2468 = int_to_ptr.vmem [resolvable:$true] %s2467
          %2473 = dma.vmem_to_hbm [thread:$0]  %s2468, 2048, %s2466, %s2449, 128, 128, 8
        $region104: #{tpu_custom_call.1} parent=71 // pred_fallthru
          _
        // Predicated region
        $region105: #{tpu_custom_call.1} parent=71 // pred_check
          %p2474 = pneg %p360
        $region106: #{tpu_custom_call.1} parent=71 // pred_check_branch
          %2476 = sbr.rel (%p2474) target = $region108
        $region107: #{tpu_custom_call.1} parent=71 // pred_region
          %s2477 = smul.u32 16, %s38
          %s2479 = ssub.s32 2048, 2048
          %2480 = vsyncadd %s2454, %s2479
          %s2481 = smul.addr %s2477, 128
          %s2482 = scalar_lea.hbm %s14, %s2481
          %s2483 = sshll.u32 %s2457, 4
          %s2484 = int_to_ptr.vmem [resolvable:$true] %s2483
          %2489 = dma.vmem_to_hbm [thread:$0]  %s2484, 2048, %s2482, %s2454, 128, 128, 8
        $region108: #{tpu_custom_call.1} parent=71 // pred_fallthru
          _
      $region72: #{tpu_custom_call.1} parent=5 // pred_fallthru
        _
      %p2490 = scmp.le.s32.totalorder 2, %s33
      // Predicated region
      $region109: #{tpu_custom_call.1} parent=5 // pred_check
        %p2491 = pneg %p2490
      $region110: #{tpu_custom_call.1} parent=5 // pred_check_branch
        %2493 = sbr.rel (%p2491) target = $region112
      $region111: #{tpu_custom_call.1} parent=5 // pred_region
        %s2494 = ssub.s32 %s33, 2
        // Predicated region
        $region113: #{tpu_custom_call.1} parent=111 // pred_check
          %p2495 = pneg %p340
        $region114: #{tpu_custom_call.1} parent=111 // pred_check_branch
          %2497 = sbr.rel (%p2495) target = $region116
        $region115: #{tpu_custom_call.1} parent=111 // pred_region
          %s2498 = sand.u32 %s325, 1
          %s2499 = scalar_lea.sflag [#allocation4], %s2498
          %s2500 = sand.u32 %s325, 1
          %s2501 = smul.addr %s2500, 128
          %s2502 = scalar_lea.vmem [#allocation14], %s2501
          %2503 = dma.done %s2499, 2048
        $region116: #{tpu_custom_call.1} parent=111 // pred_fallthru
          _
        // Predicated region
        $region117: #{tpu_custom_call.1} parent=111 // pred_check
          %p2504 = pneg %p366
        $region118: #{tpu_custom_call.1} parent=111 // pred_check_branch
          %2506 = sbr.rel (%p2504) target = $region120
        $region119: #{tpu_custom_call.1} parent=111 // pred_region
          %s2507 = sand.u32 %s351, 1
          %s2508 = scalar_lea.sflag [#allocation16], %s2507
          %s2509 = sand.u32 %s351, 1
          %s2510 = smul.addr %s2509, 128
          %s2511 = scalar_lea.vmem [#allocation15], %s2510
          %2512 = dma.done %s2508, 2048
        $region120: #{tpu_custom_call.1} parent=111 // pred_fallthru
          _
      $region112: #{tpu_custom_call.1} parent=5 // pred_fallthru
        _
    $region6: #{tpu_custom_call.1} parent=1 // loop_footer
      %s37 = sadd.s32 1, %s33
    $region7: #{tpu_custom_call.1} parent=1 // loop_footer_branch
      %32 = sbr.rel target = $region3
    $region8: #{tpu_custom_call.1} parent=1 // loop_exit
      _
    %2513 = vsyncpa [#allocation3], 1
    %s2514 = scalar_lea.sflag [#allocation3], 1
    %2515 = vsyncpa %s2514, 1
    %2516 = vsyncpa [#allocation6], 1
    %2517 = vsyncpa [#allocation9], 1
    %2518 = vsyncpa [#allocation12], 1
    %2519 = vsyncpa [#allocation4], 1
    %s2520 = scalar_lea.sflag [#allocation4], 1
    %2521 = vsyncpa %s2520, 1
    %2522 = vsyncpa [#allocation16], 1
    %s2523 = scalar_lea.sflag [#allocation16], 1
    %2524 = vsyncpa %s2523, 1

</llo_original>
